<compile_context>
chip_gen: v7x
topology: tpu7x:2x2x1
jax: 0.10.0
libtpu: 0.0.40
codegen_flags: <defaults>
</compile_context>

<pallas_src>
import math

import jax
import jax.numpy as jnp
from jax.experimental import pallas as pl
from jax.experimental.pallas import tpu as pltpu


# ------------------------------ small helpers ------------------------------

def _round_up(x, m):
    return ((x + m - 1) // m) * m


def _pick_tile(dim, target):
    """Tile for an axis that may be zero-padded: full dim if small, else target."""
    return dim if dim <= target else target


def _pick_tile_exact(dim, target):
    """Tile for an axis that must NOT be padded (softmax KV axis, head axis)."""
    return target if dim % target == 0 else dim


def _pad_to(a, shape):
    pads = [(0, t - s) for s, t in zip(a.shape, shape)]
    if all(p == (0, 0) for p in pads):
        return a
    return jnp.pad(a, pads)


# ------------------------- tiled batched linear (MXU) ----------------------

def _batched_linear_kernel(x_ref, w_ref, b_ref, o_ref, acc_ref):
    # grid = (P, M/tm, N/tn, K/tk); K (reduction) is the innermost axis.
    k = pl.program_id(3)

    @pl.when(k == 0)
    def _init():
        acc_ref[...] = jnp.zeros(acc_ref.shape, acc_ref.dtype)

    # bf16 x bf16 -> f32 accumulation on the MXU.
    acc_ref[...] += jnp.dot(x_ref[0], w_ref[0],
                            preferred_element_type=jnp.float32)

    @pl.when(k == pl.num_programs(3) - 1)
    def _finalize():
        # Bias added exactly once, hoisted out of the K loop.
        o_ref[0] = (acc_ref[...] + b_ref[0]).astype(o_ref.dtype)


def pallas_batched_linear(x, w, b, *, out_dtype, tm=256, tn=256, tk=512):
    """y[p] = x[p] @ w[p] + b[p].

    x: (P, M, K), w: (P, K, N), b: (P, 1, N) -> (P, M, N) in `out_dtype`.
    Operands are cast to bf16 for the MXU; accumulation is f32 in VMEM scratch.
    Zero-padding of M/N/K (when a dim exceeds its tile target) is exact for an
    affine layer and padded rows/cols are sliced off afterwards.
    """
    P, M, K = x.shape
    N = w.shape[2]

    tm = _pick_tile(M, tm)
    tn = _pick_tile(N, tn)
    tk = _pick_tile(K, tk)
    Mp, Np, Kp = _round_up(M, tm), _round_up(N, tn), _round_up(K, tk)

    x_p = _pad_to(x.astype(jnp.bfloat16), (P, Mp, Kp))
    w_p = _pad_to(w.astype(jnp.bfloat16), (P, Kp, Np))
    b_p = _pad_to(b.astype(jnp.float32), (P, 1, Np))

    grid = (P, Mp // tm, Np // tn, Kp // tk)

    out = pl.pallas_call(
        _batched_linear_kernel,
        out_shape=jax.ShapeDtypeStruct((P, Mp, Np), out_dtype),
        grid=grid,
        in_specs=[
            pl.BlockSpec((1, tm, tk), lambda p, i, j, k: (p, i, k)),
            pl.BlockSpec((1, tk, tn), lambda p, i, j, k: (p, k, j)),
            pl.BlockSpec((1, 1, tn), lambda p, i, j, k: (p, 0, j)),
        ],
        out_specs=pl.BlockSpec((1, tm, tn), lambda p, i, j, k: (p, i, j)),
        scratch_shapes=[pltpu.VMEM((tm, tn), jnp.float32)],
        compiler_params=pltpu.CompilerParams(
            dimension_semantics=("parallel", "parallel", "parallel",
                                 "arbitrary")),
    )(x_p, w_p, b_p)
    return out[:, :M, :N]


# ---------------------- flash attention (online softmax) -------------------

def _flash_attention_kernel(q_ref, k_ref, v_ref, o_ref, m_sc, l_sc, acc_sc):
    kv = pl.program_id(2)

    @pl.when(kv == 0)
    def _init():
        m_sc[...] = jnp.full(m_sc.shape, -jnp.inf, dtype=m_sc.dtype)
        l_sc[...] = jnp.zeros(l_sc.shape, l_sc.dtype)
        acc_sc[...] = jnp.zeros(acc_sc.shape, acc_sc.dtype)

    # (hb, tq, d) x (hb, tk, d) -> (hb, tq, tk): contraction on the last dims,
    # so the MXU consumes K directly (no explicit transpose / XLU pass).
    # The 1/sqrt(d_k) scale is already folded into the Q projection weights.
    s = jnp.einsum("bqd,bkd->bqk", q_ref[...], k_ref[...],
                   preferred_element_type=jnp.float32)
    # TODO(synk): optional `mask` (masked_fill with -1e9) not wired in; this
    # implements the mask=None path of the PyTorch forward.
    m_prev = m_sc[...]
    m_new = jnp.maximum(m_prev, jnp.max(s, axis=-1, keepdims=True))
    alpha = jnp.exp(m_prev - m_new)
    p = jnp.exp(s - m_new)
    l_sc[...] = alpha * l_sc[...] + jnp.sum(p, axis=-1, keepdims=True)
    acc_sc[...] = alpha * acc_sc[...] + jnp.einsum(
        "bqk,bkd->bqd", p.astype(v_ref.dtype), v_ref[...],
        preferred_element_type=jnp.float32)
    m_sc[...] = m_new

    # TODO(synk): dropout on the attention weights is identity (eval mode).
    @pl.when(kv == pl.num_programs(2) - 1)
    def _finalize():
        inv_l = pl.reciprocal(l_sc[...], approx=True)
        o_ref[...] = (acc_sc[...] * inv_l).astype(o_ref.dtype)


def pallas_flash_attention(q, k, v, *, hb_target=8, tq_target=256,
                           tk_target=256):
    """q, k, v: (B*H, S, d_k) bf16 -> (B*H, S, d_k) bf16 (softmax(qk^T) v)."""
    BH, S, d_k = q.shape
    hb = _pick_tile_exact(BH, hb_target)   # heads processed per grid step
    tq = _pick_tile_exact(S, tq_target)
    tk = _pick_tile_exact(S, tk_target)    # KV axis must not be padded

    q_spec = pl.BlockSpec((hb, tq, d_k), lambda b, qi, ki: (b, qi, 0))
    kv_spec = pl.BlockSpec((hb, tk, d_k), lambda b, qi, ki: (b, ki, 0))

    return pl.pallas_call(
        _flash_attention_kernel,
        out_shape=jax.ShapeDtypeStruct((BH, S, d_k), q.dtype),
        grid=(BH // hb, S // tq, S // tk),
        in_specs=[q_spec, kv_spec, kv_spec],
        out_specs=q_spec,
        scratch_shapes=[
            pltpu.VMEM((hb, tq, 1), jnp.float32),     # running max m
            pltpu.VMEM((hb, tq, 1), jnp.float32),     # running sum l
            pltpu.VMEM((hb, tq, d_k), jnp.float32),   # output accumulator
        ],
        compiler_params=pltpu.CompilerParams(
            dimension_semantics=("parallel", "parallel", "arbitrary")),
    )(q, k, v)


# ------------------------------ Module glue -------------------------------

def init_params(key, embedding_dim):
    """Deterministic init of 4 Linear(E, E) layers (weights stored as (E_in, E_out))."""
    bound = 1.0 / math.sqrt(embedding_dim)
    names = ["q", "k", "v", "o"]
    params = {}
    keys = jax.random.split(key, 8)
    for i, n in enumerate(names):
        params["w" + n] = jax.random.uniform(
            keys[2 * i], (embedding_dim, embedding_dim),
            minval=-bound, maxval=bound, dtype=jnp.float32)
        params["b" + n] = jax.random.uniform(
            keys[2 * i + 1], (1, embedding_dim),
            minval=-bound, maxval=bound, dtype=jnp.float32)
    return params


def multi_headed_attention(params, query, key, value, head):
    B, S, E = query.shape
    # TODO(synk): cross-attention (key/value with different seq length) not
    # wired into the fused/stacked projection path.
    assert key.shape == query.shape and value.shape == query.shape
    d_k = E // head
    scale = 1.0 / math.sqrt(d_k)
    M = B * S

    # Fold the 1/sqrt(d_k) softmax scale into the Q projection (free at
    # runtime), and fuse the three projections into ONE pallas_call by
    # stacking along a leading axis of 3 (one pipeline fill/drain, shared
    # tiling, bf16 MXU inputs).
    w_all = jnp.stack([params["wq"] * scale, params["wk"], params["wv"]])
    b_all = jnp.stack([params["bq"] * scale, params["bk"], params["bv"]])
    x_all = jnp.stack([query.reshape(M, E), key.reshape(M, E),
                       value.reshape(M, E)])

    qkv = pallas_batched_linear(x_all, w_all, b_all,
                                out_dtype=jnp.bfloat16)       # (3, M, E) bf16

    # TODO(synk): the head split/merge transposes remain XLA-level reshapes;
    # at toy d_k they are cheap, fusing them into BlockSpecs needs d_k >= 128.
    def split_heads(x2d):
        return (x2d.reshape(B, S, head, d_k)
                   .transpose(0, 2, 1, 3)
                   .reshape(B * head, S, d_k))

    q = split_heads(qkv[0])
    k = split_heads(qkv[1])
    v = split_heads(qkv[2])

    ctx = pallas_flash_attention(q, k, v)                      # (B*H, S, d_k)
    ctx = (ctx.reshape(B, head, S, d_k)
              .transpose(0, 2, 1, 3)
              .reshape(M, E))

    out = pallas_batched_linear(ctx[None], params["wo"][None],
                                params["bo"][None],
                                out_dtype=jnp.float32)[0]      # (M, E) f32
    return out.reshape(B, S, E)


# Pure-JAX f32 reference (PyTorch forward semantics, eval mode, mask=None).
def reference(params, query, key, value, head):
    B, S, E = query.shape
    d_k = E // head

    def lin(x, w, b):
        return x @ w + b[0]

    def split(x):
        return x.reshape(B, S, head, d_k).transpose(0, 2, 1, 3)

    q = split(lin(query, params["wq"], params["bq"]))
    k = split(lin(key, params["wk"], params["bk"]))
    v = split(lin(value, params["wv"], params["bv"]))
    scores = jnp.einsum("bhqd,bhkd->bhqk", q, k) / math.sqrt(d_k)
    p = jax.nn.softmax(scores, axis=-1)
    x = jnp.einsum("bhqk,bhkd->bhqd", p, v)
    x = x.transpose(0, 2, 1, 3).reshape(B, S, E)
    return lin(x, params["wo"], params["bo"])


if __name__ == "__main__":
    batch, seq, embed, head = 2, 8, 32, 4

    root = jax.random.PRNGKey(0)
    kp, kq, kk, kv = jax.random.split(root, 4)
    params = init_params(kp, embed)
    query = jax.random.normal(kq, (batch, seq, embed), dtype=jnp.float32)
    key_ = jax.random.normal(kk, (batch, seq, embed), dtype=jnp.float32)
    value = jax.random.normal(kv, (batch, seq, embed), dtype=jnp.float32)

    mha = jax.jit(multi_headed_attention, static_argnums=(4,))
    out = jax.block_until_ready(mha(params, query, key_, value, head))

    ref = reference(params, query, key_, value, head)
    assert out.shape == (batch, seq, embed)
    max_err = float(jnp.max(jnp.abs(out - ref)))
    # bf16 MXU inputs (f32 accumulation) vs pure-f32 reference -> relaxed tol.
    assert jnp.allclose(out, ref, atol=5e-2, rtol=5e-2), (
        f"mismatch vs reference (max abs err {max_err})")

    print("KERNEL_OK")
</pallas_src>

<mosaic_0001>
module attributes {stable_mosaic.version = 11 : i64} {
  func.func @_batched_linear_kernel(%arg0: i32, %arg1: i32, %arg2: i32, %arg3: i32, %arg4: memref<1x16x32xbf16, #tpu.memory_space<vmem>>, %arg5: memref<1x32x32xbf16, #tpu.memory_space<vmem>>, %arg6: memref<1x1x32xf32, #tpu.memory_space<vmem>>, %arg7: memref<1x16x32xbf16, #tpu.memory_space<vmem>>, %arg8: memref<16x32xf32, #tpu.memory_space<vmem>>) attributes {dimension_semantics = [#tpu.dimension_semantics<parallel>, #tpu.dimension_semantics<parallel>, #tpu.dimension_semantics<parallel>, #tpu.dimension_semantics<arbitrary>], iteration_bounds = array<i64: 3, 1, 1, 1>, scalar_prefetch = 0 : i64, scratch_operands = 1 : i64, tpu.core_type = #tpu.core_type<tc>, window_params = [{transform_indices = @transform_0, window_bounds = array<i64: 1, 16, 32>}, {transform_indices = @transform_1, window_bounds = array<i64: 1, 32, 32>}, {transform_indices = @transform_2, window_bounds = array<i64: 1, 1, 32>}, {transform_indices = @transform_3, window_bounds = array<i64: 1, 16, 32>}]} {
    %c0_i32 = arith.constant 0 : i32
    %0 = arith.cmpi eq, %arg3, %c0_i32 : i32
    %1 = arith.extui %0 : i1 to i32
    %c0_i32_0 = arith.constant 0 : i32
    %2 = arith.cmpi ne, %1, %c0_i32_0 : i32
    scf.if %2 {
      %cst_12 = arith.constant 0.000000e+00 : f32
      %14 = vector.broadcast %cst_12 : f32 to vector<16x32xf32>
      %c0_13 = arith.constant 0 : index
      %c0_14 = arith.constant 0 : index
      %15 = vector.load %arg8[%c0_13, %c0_14] : memref<16x32xf32, #tpu.memory_space<vmem>>, vector<16x32xf32>
      tpu.vector_store %arg8[%c0_13, %c0_14], %14 {strides = array<i32>} : memref<16x32xf32, #tpu.memory_space<vmem>>, vector<16x32xf32>,
    } else {
    }
    %c0 = arith.constant 0 : index
    %c0_1 = arith.constant 0 : index
    %3 = vector.load %arg8[%c0, %c0_1] : memref<16x32xf32, #tpu.memory_space<vmem>>, vector<16x32xf32>
    %c0_2 = arith.constant 0 : index
    %c0_3 = arith.constant 0 : index
    %c0_4 = arith.constant 0 : index
    %4 = vector.load %arg4[%c0_2, %c0_3, %c0_4] : memref<1x16x32xbf16, #tpu.memory_space<vmem>>, vector<1x16x32xbf16>
    %5 = vector.shape_cast %4 : vector<1x16x32xbf16> to vector<16x32xbf16>
    %c0_5 = arith.constant 0 : index
    %c0_6 = arith.constant 0 : index
    %c0_7 = arith.constant 0 : index
    %6 = vector.load %arg5[%c0_5, %c0_6, %c0_7] : memref<1x32x32xbf16, #tpu.memory_space<vmem>>, vector<1x32x32xbf16>
    %7 = vector.shape_cast %6 : vector<1x32x32xbf16> to vector<32x32xbf16>
    %cst = arith.constant dense<0.000000e+00> : vector<16x32xf32>
    %8 = tpu.matmul %5, %7, %cst {dimension_numbers = #tpu.dot_dimension_numbers<[1], [0], [0], [1], [0, 0, 1, 1], [], []>} : vector<16x32xbf16>, vector<32x32xbf16>, vector<16x32xf32> -> vector<16x32xf32>
    %9 = arith.addf %3, %8 : vector<16x32xf32>
    %c0_8 = arith.constant 0 : index
    %c0_9 = arith.constant 0 : index
    %10 = vector.load %arg8[%c0_8, %c0_9] : memref<16x32xf32, #tpu.memory_space<vmem>>, vector<16x32xf32>
    tpu.vector_store %arg8[%c0_8, %c0_9], %9 {strides = array<i32>} : memref<16x32xf32, #tpu.memory_space<vmem>>, vector<16x32xf32>,
    %c0_i32_10 = arith.constant 0 : i32
    %11 = arith.cmpi eq, %arg3, %c0_i32_10 : i32
    %12 = arith.extui %11 : i1 to i32
    %c0_i32_11 = arith.constant 0 : i32
    %13 = arith.cmpi ne, %12, %c0_i32_11 : i32
    scf.if %13 {
      %c0_12 = arith.constant 0 : index
      %c0_13 = arith.constant 0 : index
      %14 = vector.load %arg8[%c0_12, %c0_13] : memref<16x32xf32, #tpu.memory_space<vmem>>, vector<16x32xf32>
      %c0_14 = arith.constant 0 : index
      %c0_15 = arith.constant 0 : index
      %c0_16 = arith.constant 0 : index
      %15 = vector.load %arg6[%c0_14, %c0_15, %c0_16] : memref<1x1x32xf32, #tpu.memory_space<vmem>>, vector<1x1x32xf32>
      %16 = vector.shape_cast %15 : vector<1x1x32xf32> to vector<1x32xf32>
      %17 = vector.broadcast %16 : vector<1x32xf32> to vector<16x32xf32>
      %18 = arith.addf %14, %17 : vector<16x32xf32>
      %19 = arith.truncf %18 : vector<16x32xf32> to vector<16x32xbf16>
      %c0_17 = arith.constant 0 : index
      %c0_18 = arith.constant 0 : index
      %c0_19 = arith.constant 0 : index
      %20 = vector.load %arg7[%c0_17, %c0_18, %c0_19] : memref<1x16x32xbf16, #tpu.memory_space<vmem>>, vector<1x16x32xbf16>
      %21 = vector.shape_cast %20 : vector<1x16x32xbf16> to vector<16x32xbf16>
      %22 = vector.shape_cast %19 : vector<16x32xbf16> to vector<1x16x32xbf16>
      tpu.vector_store %arg7[%c0_17, %c0_18, %c0_19], %22 {strides = array<i32>} : memref<1x16x32xbf16, #tpu.memory_space<vmem>>, vector<1x16x32xbf16>,
    } else {
    }
    return
  }
  func.func @transform_0(%arg0: i32, %arg1: i32, %arg2: i32, %arg3: i32) -> (i32, i32, i32) {
    %c0_i32 = arith.constant 0 : i32
    return %arg0, %arg1, %arg3 : i32, i32, i32
  }
  func.func @transform_1(%arg0: i32, %arg1: i32, %arg2: i32, %arg3: i32) -> (i32, i32, i32) {
    %c0_i32 = arith.constant 0 : i32
    return %arg0, %arg3, %arg2 : i32, i32, i32
  }
  func.func @transform_2(%arg0: i32, %arg1: i32, %arg2: i32, %arg3: i32) -> (i32, i32, i32) {
    %c0_i32 = arith.constant 0 : i32
    %c0_i32_0 = arith.constant 0 : i32
    return %arg0, %c0_i32, %arg2 : i32, i32, i32
  }
  func.func @transform_3(%arg0: i32, %arg1: i32, %arg2: i32, %arg3: i32) -> (i32, i32, i32) {
    %c0_i32 = arith.constant 0 : i32
    return %arg0, %arg1, %arg2 : i32, i32, i32
  }
}

module attributes {stable_mosaic.version = 11 : i64} {
  func.func @_flash_attention_kernel(%arg0: i32, %arg1: i32, %arg2: i32, %arg3: memref<8x8x8xbf16, #tpu.memory_space<vmem>>, %arg4: memref<8x8x8xbf16, #tpu.memory_space<vmem>>, %arg5: memref<8x8x8xbf16, #tpu.memory_space<vmem>>, %arg6: memref<8x8x8xbf16, #tpu.memory_space<vmem>>, %arg7: memref<8x8x1xf32, #tpu.memory_space<vmem>>, %arg8: memref<8x8x1xf32, #tpu.memory_space<vmem>>, %arg9: memref<8x8x8xf32, #tpu.memory_space<vmem>>) attributes {dimension_semantics = [#tpu.dimension_semantics<parallel>, #tpu.dimension_semantics<parallel>, #tpu.dimension_semantics<arbitrary>], iteration_bounds = array<i64: 1, 1, 1>, scalar_prefetch = 0 : i64, scratch_operands = 3 : i64, tpu.core_type = #tpu.core_type<tc>, window_params = [{transform_indices = @transform_0, window_bounds = array<i64: 8, 8, 8>}, {transform_indices = @transform_1, window_bounds = array<i64: 8, 8, 8>}, {transform_indices = @transform_2, window_bounds = array<i64: 8, 8, 8>}, {transform_indices = @transform_3, window_bounds = array<i64: 8, 8, 8>}]} {
    %c0_i32 = arith.constant 0 : i32
    %0 = arith.cmpi eq, %arg2, %c0_i32 : i32
    %1 = arith.extui %0 : i1 to i32
    %c0_i32_0 = arith.constant 0 : i32
    %2 = arith.cmpi ne, %1, %c0_i32_0 : i32
    scf.if %2 {
      %cst_32 = arith.constant 0xFF800000 : f32
      %33 = vector.broadcast %cst_32 : f32 to vector<8x8x1xf32>
      %c0_33 = arith.constant 0 : index
      %c0_34 = arith.constant 0 : index
      %c0_35 = arith.constant 0 : index
      %34 = vector.load %arg7[%c0_33, %c0_34, %c0_35] : memref<8x8x1xf32, #tpu.memory_space<vmem>>, vector<8x8x1xf32>
      tpu.vector_store %arg7[%c0_33, %c0_34, %c0_35], %33 {strides = array<i32>} : memref<8x8x1xf32, #tpu.memory_space<vmem>>, vector<8x8x1xf32>,
      %cst_36 = arith.constant 0.000000e+00 : f32
      %35 = vector.broadcast %cst_36 : f32 to vector<8x8x1xf32>
      %c0_37 = arith.constant 0 : index
      %c0_38 = arith.constant 0 : index
      %c0_39 = arith.constant 0 : index
      %36 = vector.load %arg8[%c0_37, %c0_38, %c0_39] : memref<8x8x1xf32, #tpu.memory_space<vmem>>, vector<8x8x1xf32>
      tpu.vector_store %arg8[%c0_37, %c0_38, %c0_39], %35 {strides = array<i32>} : memref<8x8x1xf32, #tpu.memory_space<vmem>>, vector<8x8x1xf32>,
      %cst_40 = arith.constant 0.000000e+00 : f32
      %37 = vector.broadcast %cst_40 : f32 to vector<8x8x8xf32>
      %c0_41 = arith.constant 0 : index
      %c0_42 = arith.constant 0 : index
      %c0_43 = arith.constant 0 : index
      %38 = vector.load %arg9[%c0_41, %c0_42, %c0_43] : memref<8x8x8xf32, #tpu.memory_space<vmem>>, vector<8x8x8xf32>
      tpu.vector_store %arg9[%c0_41, %c0_42, %c0_43], %37 {strides = array<i32>} : memref<8x8x8xf32, #tpu.memory_space<vmem>>, vector<8x8x8xf32>,
    } else {
    }
    %c0 = arith.constant 0 : index
    %c0_1 = arith.constant 0 : index
    %c0_2 = arith.constant 0 : index
    %3 = vector.load %arg3[%c0, %c0_1, %c0_2] : memref<8x8x8xbf16, #tpu.memory_space<vmem>>, vector<8x8x8xbf16>
    %c0_3 = arith.constant 0 : index
    %c0_4 = arith.constant 0 : index
    %c0_5 = arith.constant 0 : index
    %4 = vector.load %arg4[%c0_3, %c0_4, %c0_5] : memref<8x8x8xbf16, #tpu.memory_space<vmem>>, vector<8x8x8xbf16>
    "tpu.trace_start"() <{level = 10 : i32, message = "bqd,bkd->bqk"}> : () -> ()
    %cst = arith.constant dense<0.000000e+00> : vector<8x8x8xf32>
    %5 = tpu.matmul %3, %4, %cst {dimension_numbers = #tpu.dot_dimension_numbers<[2], [2], [1], [1], [0, 0, 0, 1, 1, 1], [0], [0]>} : vector<8x8x8xbf16>, vector<8x8x8xbf16>, vector<8x8x8xf32> -> vector<8x8x8xf32>
    "tpu.trace_stop"() : () -> ()
    %c0_6 = arith.constant 0 : index
    %c0_7 = arith.constant 0 : index
    %c0_8 = arith.constant 0 : index
    %6 = vector.load %arg7[%c0_6, %c0_7, %c0_8] : memref<8x8x1xf32, #tpu.memory_space<vmem>>, vector<8x8x1xf32>
    %cst_9 = arith.constant dense<0xFF800000> : vector<8x8xf32>
    %7 = vector.multi_reduction <maximumf>, %5, %cst_9 [2] : vector<8x8x8xf32> to vector<8x8xf32>
    %8 = vector.shape_cast %7 : vector<8x8xf32> to vector<8x8x1xf32>
    %9 = arith.maximumf %6, %8 : vector<8x8x1xf32>
    %10 = arith.subf %6, %9 : vector<8x8x1xf32>
    %11 = math.exp %10 : vector<8x8x1xf32>
    %12 = vector.broadcast %9 : vector<8x8x1xf32> to vector<8x8x8xf32>
    %13 = arith.subf %5, %12 : vector<8x8x8xf32>
    %14 = math.exp %13 : vector<8x8x8xf32>
    %c0_10 = arith.constant 0 : index
    %c0_11 = arith.constant 0 : index
    %c0_12 = arith.constant 0 : index
    %15 = vector.load %arg8[%c0_10, %c0_11, %c0_12] : memref<8x8x1xf32, #tpu.memory_space<vmem>>, vector<8x8x1xf32>
    %16 = arith.mulf %11, %15 : vector<8x8x1xf32>
    %cst_13 = arith.constant dense<0.000000e+00> : vector<8x8xf32>
    %17 = vector.multi_reduction <add>, %14, %cst_13 [2] : vector<8x8x8xf32> to vector<8x8xf32>
    %18 = vector.shape_cast %17 : vector<8x8xf32> to vector<8x8x1xf32>
    %19 = arith.addf %16, %18 : vector<8x8x1xf32>
    %c0_14 = arith.constant 0 : index
    %c0_15 = arith.constant 0 : index
    %c0_16 = arith.constant 0 : index
    %20 = vector.load %arg8[%c0_14, %c0_15, %c0_16] : memref<8x8x1xf32, #tpu.memory_space<vmem>>, vector<8x8x1xf32>
    tpu.vector_store %arg8[%c0_14, %c0_15, %c0_16], %19 {strides = array<i32>} : memref<8x8x1xf32, #tpu.memory_space<vmem>>, vector<8x8x1xf32>,
    %c0_17 = arith.constant 0 : index
    %c0_18 = arith.constant 0 : index
    %c0_19 = arith.constant 0 : index
    %21 = vector.load %arg9[%c0_17, %c0_18, %c0_19] : memref<8x8x8xf32, #tpu.memory_space<vmem>>, vector<8x8x8xf32>
    %22 = vector.broadcast %11 : vector<8x8x1xf32> to vector<8x8x8xf32>
    %23 = arith.mulf %22, %21 : vector<8x8x8xf32>
    %24 = arith.truncf %14 : vector<8x8x8xf32> to vector<8x8x8xbf16>
    %c0_20 = arith.constant 0 : index
    %c0_21 = arith.constant 0 : index
    %c0_22 = arith.constant 0 : index
    %25 = vector.load %arg5[%c0_20, %c0_21, %c0_22] : memref<8x8x8xbf16, #tpu.memory_space<vmem>>, vector<8x8x8xbf16>
    "tpu.trace_start"() <{level = 10 : i32, message = "bqk,bkd->bqd"}> : () -> ()
    %cst_23 = arith.constant dense<0.000000e+00> : vector<8x8x8xf32>
    %26 = tpu.matmul %24, %25, %cst_23 {dimension_numbers = #tpu.dot_dimension_numbers<[2], [1], [1], [2], [0, 0, 0, 1, 1, 2], [0], [0]>} : vector<8x8x8xbf16>, vector<8x8x8xbf16>, vector<8x8x8xf32> -> vector<8x8x8xf32>
    "tpu.trace_stop"() : () -> ()
    %27 = arith.addf %23, %26 : vector<8x8x8xf32>
    %c0_24 = arith.constant 0 : index
    %c0_25 = arith.constant 0 : index
    %c0_26 = arith.constant 0 : index
    %28 = vector.load %arg9[%c0_24, %c0_25, %c0_26] : memref<8x8x8xf32, #tpu.memory_space<vmem>>, vector<8x8x8xf32>
    tpu.vector_store %arg9[%c0_24, %c0_25, %c0_26], %27 {strides = array<i32>} : memref<8x8x8xf32, #tpu.memory_space<vmem>>, vector<8x8x8xf32>,
    %c0_27 = arith.constant 0 : index
    %c0_28 = arith.constant 0 : index
    %c0_29 = arith.constant 0 : index
    %29 = vector.load %arg7[%c0_27, %c0_28, %c0_29] : memref<8x8x1xf32, #tpu.memory_space<vmem>>, vector<8x8x1xf32>
    tpu.vector_store %arg7[%c0_27, %c0_28, %c0_29], %9 {strides = array<i32>} : memref<8x8x1xf32, #tpu.memory_space<vmem>>, vector<8x8x1xf32>,
    %c0_i32_30 = arith.constant 0 : i32
    %30 = arith.cmpi eq, %arg2, %c0_i32_30 : i32
    %31 = arith.extui %30 : i1 to i32
    %c0_i32_31 = arith.constant 0 : i32
    %32 = arith.cmpi ne, %31, %c0_i32_31 : i32
    scf.if %32 {
      %c0_32 = arith.constant 0 : index
      %c0_33 = arith.constant 0 : index
      %c0_34 = arith.constant 0 : index
      %33 = vector.load %arg8[%c0_32, %c0_33, %c0_34] : memref<8x8x1xf32, #tpu.memory_space<vmem>>, vector<8x8x1xf32>
      %34 = tpu.reciprocal %33 {approx = true} : vector<8x8x1xf32> -> vector<8x8x1xf32>
      %c0_35 = arith.constant 0 : index
      %c0_36 = arith.constant 0 : index
      %c0_37 = arith.constant 0 : index
      %35 = vector.load %arg9[%c0_35, %c0_36, %c0_37] : memref<8x8x8xf32, #tpu.memory_space<vmem>>, vector<8x8x8xf32>
      %36 = vector.broadcast %34 : vector<8x8x1xf32> to vector<8x8x8xf32>
      %37 = arith.mulf %35, %36 : vector<8x8x8xf32>
      %38 = arith.truncf %37 : vector<8x8x8xf32> to vector<8x8x8xbf16>
      %c0_38 = arith.constant 0 : index
      %c0_39 = arith.constant 0 : index
      %c0_40 = arith.constant 0 : index
      %39 = vector.load %arg6[%c0_38, %c0_39, %c0_40] : memref<8x8x8xbf16, #tpu.memory_space<vmem>>, vector<8x8x8xbf16>
      tpu.vector_store %arg6[%c0_38, %c0_39, %c0_40], %38 {strides = array<i32>} : memref<8x8x8xbf16, #tpu.memory_space<vmem>>, vector<8x8x8xbf16>,
    } else {
    }
    return
  }
  func.func @transform_0(%arg0: i32, %arg1: i32, %arg2: i32) -> (i32, i32, i32) {
    %c0_i32 = arith.constant 0 : i32
    %c0_i32_0 = arith.constant 0 : i32
    return %arg0, %arg1, %c0_i32 : i32, i32, i32
  }
  func.func @transform_1(%arg0: i32, %arg1: i32, %arg2: i32) -> (i32, i32, i32) {
    %c0_i32 = arith.constant 0 : i32
    %c0_i32_0 = arith.constant 0 : i32
    return %arg0, %arg2, %c0_i32 : i32, i32, i32
  }
  func.func @transform_2(%arg0: i32, %arg1: i32, %arg2: i32) -> (i32, i32, i32) {
    %c0_i32 = arith.constant 0 : i32
    %c0_i32_0 = arith.constant 0 : i32
    return %arg0, %arg2, %c0_i32 : i32, i32, i32
  }
  func.func @transform_3(%arg0: i32, %arg1: i32, %arg2: i32) -> (i32, i32, i32) {
    %c0_i32 = arith.constant 0 : i32
    %c0_i32_0 = arith.constant 0 : i32
    return %arg0, %arg1, %c0_i32 : i32, i32, i32
  }
}

module attributes {stable_mosaic.version = 11 : i64} {
  func.func @_batched_linear_kernel(%arg0: i32, %arg1: i32, %arg2: i32, %arg3: i32, %arg4: memref<1x16x32xbf16, #tpu.memory_space<vmem>>, %arg5: memref<1x32x32xbf16, #tpu.memory_space<vmem>>, %arg6: memref<1x1x32xf32, #tpu.memory_space<vmem>>, %arg7: memref<1x16x32xf32, #tpu.memory_space<vmem>>, %arg8: memref<16x32xf32, #tpu.memory_space<vmem>>) attributes {dimension_semantics = [#tpu.dimension_semantics<parallel>, #tpu.dimension_semantics<parallel>, #tpu.dimension_semantics<parallel>, #tpu.dimension_semantics<arbitrary>], iteration_bounds = array<i64: 1, 1, 1, 1>, scalar_prefetch = 0 : i64, scratch_operands = 1 : i64, tpu.core_type = #tpu.core_type<tc>, window_params = [{transform_indices = @transform_0, window_bounds = array<i64: 1, 16, 32>}, {transform_indices = @transform_1, window_bounds = array<i64: 1, 32, 32>}, {transform_indices = @transform_2, window_bounds = array<i64: 1, 1, 32>}, {transform_indices = @transform_3, window_bounds = array<i64: 1, 16, 32>}]} {
    %c0_i32 = arith.constant 0 : i32
    %0 = arith.cmpi eq, %arg3, %c0_i32 : i32
    %1 = arith.extui %0 : i1 to i32
    %c0_i32_0 = arith.constant 0 : i32
    %2 = arith.cmpi ne, %1, %c0_i32_0 : i32
    scf.if %2 {
      %cst_12 = arith.constant 0.000000e+00 : f32
      %14 = vector.broadcast %cst_12 : f32 to vector<16x32xf32>
      %c0_13 = arith.constant 0 : index
      %c0_14 = arith.constant 0 : index
      %15 = vector.load %arg8[%c0_13, %c0_14] : memref<16x32xf32, #tpu.memory_space<vmem>>, vector<16x32xf32>
      tpu.vector_store %arg8[%c0_13, %c0_14], %14 {strides = array<i32>} : memref<16x32xf32, #tpu.memory_space<vmem>>, vector<16x32xf32>,
    } else {
    }
    %c0 = arith.constant 0 : index
    %c0_1 = arith.constant 0 : index
    %3 = vector.load %arg8[%c0, %c0_1] : memref<16x32xf32, #tpu.memory_space<vmem>>, vector<16x32xf32>
    %c0_2 = arith.constant 0 : index
    %c0_3 = arith.constant 0 : index
    %c0_4 = arith.constant 0 : index
    %4 = vector.load %arg4[%c0_2, %c0_3, %c0_4] : memref<1x16x32xbf16, #tpu.memory_space<vmem>>, vector<1x16x32xbf16>
    %5 = vector.shape_cast %4 : vector<1x16x32xbf16> to vector<16x32xbf16>
    %c0_5 = arith.constant 0 : index
    %c0_6 = arith.constant 0 : index
    %c0_7 = arith.constant 0 : index
    %6 = vector.load %arg5[%c0_5, %c0_6, %c0_7] : memref<1x32x32xbf16, #tpu.memory_space<vmem>>, vector<1x32x32xbf16>
    %7 = vector.shape_cast %6 : vector<1x32x32xbf16> to vector<32x32xbf16>
    %cst = arith.constant dense<0.000000e+00> : vector<16x32xf32>
    %8 = tpu.matmul %5, %7, %cst {dimension_numbers = #tpu.dot_dimension_numbers<[1], [0], [0], [1], [0, 0, 1, 1], [], []>} : vector<16x32xbf16>, vector<32x32xbf16>, vector<16x32xf32> -> vector<16x32xf32>
    %9 = arith.addf %3, %8 : vector<16x32xf32>
    %c0_8 = arith.constant 0 : index
    %c0_9 = arith.constant 0 : index
    %10 = vector.load %arg8[%c0_8, %c0_9] : memref<16x32xf32, #tpu.memory_space<vmem>>, vector<16x32xf32>
    tpu.vector_store %arg8[%c0_8, %c0_9], %9 {strides = array<i32>} : memref<16x32xf32, #tpu.memory_space<vmem>>, vector<16x32xf32>,
    %c0_i32_10 = arith.constant 0 : i32
    %11 = arith.cmpi eq, %arg3, %c0_i32_10 : i32
    %12 = arith.extui %11 : i1 to i32
    %c0_i32_11 = arith.constant 0 : i32
    %13 = arith.cmpi ne, %12, %c0_i32_11 : i32
    scf.if %13 {
      %c0_12 = arith.constant 0 : index
      %c0_13 = arith.constant 0 : index
      %14 = vector.load %arg8[%c0_12, %c0_13] : memref<16x32xf32, #tpu.memory_space<vmem>>, vector<16x32xf32>
      %c0_14 = arith.constant 0 : index
      %c0_15 = arith.constant 0 : index
      %c0_16 = arith.constant 0 : index
      %15 = vector.load %arg6[%c0_14, %c0_15, %c0_16] : memref<1x1x32xf32, #tpu.memory_space<vmem>>, vector<1x1x32xf32>
      %16 = vector.shape_cast %15 : vector<1x1x32xf32> to vector<1x32xf32>
      %17 = vector.broadcast %16 : vector<1x32xf32> to vector<16x32xf32>
      %18 = arith.addf %14, %17 : vector<16x32xf32>
      %c0_17 = arith.constant 0 : index
      %c0_18 = arith.constant 0 : index
      %c0_19 = arith.constant 0 : index
      %19 = vector.load %arg7[%c0_17, %c0_18, %c0_19] : memref<1x16x32xf32, #tpu.memory_space<vmem>>, vector<1x16x32xf32>
      %20 = vector.shape_cast %19 : vector<1x16x32xf32> to vector<16x32xf32>
      %21 = vector.shape_cast %18 : vector<16x32xf32> to vector<1x16x32xf32>
      tpu.vector_store %arg7[%c0_17, %c0_18, %c0_19], %21 {strides = array<i32>} : memref<1x16x32xf32, #tpu.memory_space<vmem>>, vector<1x16x32xf32>,
    } else {
    }
    return
  }
  func.func @transform_0(%arg0: i32, %arg1: i32, %arg2: i32, %arg3: i32) -> (i32, i32, i32) {
    %c0_i32 = arith.constant 0 : i32
    return %arg0, %arg1, %arg3 : i32, i32, i32
  }
  func.func @transform_1(%arg0: i32, %arg1: i32, %arg2: i32, %arg3: i32) -> (i32, i32, i32) {
    %c0_i32 = arith.constant 0 : i32
    return %arg0, %arg3, %arg2 : i32, i32, i32
  }
  func.func @transform_2(%arg0: i32, %arg1: i32, %arg2: i32, %arg3: i32) -> (i32, i32, i32) {
    %c0_i32 = arith.constant 0 : i32
    %c0_i32_0 = arith.constant 0 : i32
    return %arg0, %c0_i32, %arg2 : i32, i32, i32
  }
  func.func @transform_3(%arg0: i32, %arg1: i32, %arg2: i32, %arg3: i32) -> (i32, i32, i32) {
    %c0_i32 = arith.constant 0 : i32
    return %arg0, %arg1, %arg2 : i32, i32, i32
  }
}

</mosaic_0001>

<llo_original>
// kernel: squeeze.4
$region0: #{squeeze.4}
  %s0 = inlined_call_operand.vmem [shape: bf16[1,16,32], index: 0, kind: input, shape index: {}]
  %s1 = inlined_call_operand.vmem [shape: bf16[2,8,4,8], index: 1, kind: output, shape index: {}]
  $region1: #{squeeze.4} parent=0
    #allocation0 [shape = 'u8[65536]{0}', space=vmem, size = 0x10000, scoped, tag = 'scoped mem for output reshape']
    #allocation1 [shape = 'u8[8192]{0}', space=vmem, size = 0x2000, scoped, tag = 'scoped mem for input reshape']
    %s3 = smul.u32 4, 2
    %s4 = sshllo.u32 0, %s3
    %s5 = scalar_lea.vmem %s0, 4
    %s6 = sshrl.u32 %s4, 1
    %s7 = sor.u32 %s4, %s6
    %s8 = sand.u32 %s7, 85
    %s9 = sshrl.u32 %s8, 1
    %s10 = sor.u32 %s8, %s9
    %s11 = sand.u32 51, %s10
    %s12 = sshrl.u32 %s11, 2
    %s13 = sor.u32 %s11, %s12
    %s14 = sand.u32 15, %s13
    %v15 = vld [vmem:[%s5] sm:%s14]
    %v16 = vunpack.c.l.bf16 %v15
    %v17 = vunpack.c.h.bf16 %v15
    %s18 = scalar_lea.vmem [#allocation1], 8
    %19 = vst [vmem:[%s18] sm:%s4] %v16
    %s20 = sshrl.u32 %s4, 1
    %s21 = sor.u32 %s4, %s20
    %s22 = sand.u32 %s21, 85
    %s23 = sshrl.u32 %s22, 1
    %s24 = sor.u32 %s22, %s23
    %s25 = sand.u32 51, %s24
    %s26 = sshrl.u32 %s25, 2
    %s27 = sor.u32 %s25, %s26
    %s28 = sand.u32 15, %s27
    %v29 = vld [vmem:[%s0] sm:%s28]
    %v30 = vunpack.c.l.bf16 %v29
    %v31 = vunpack.c.h.bf16 %v29
    %32 = vst [vmem:[#allocation1] sm:%s4] %v30
    %v33 = vld [vmem:[#allocation1] sm:$0xff]
    %vm34 = vcmask 64512
    %35 = vst.msk [vmem:[#allocation0] ss:$8 sm:$0xf] %vm34, %v33
    %36 = vst.msk [vmem:[#allocation0] ss:$8 sm:$0xf0] %vm34, %v33
    %s37 = scalar_lea.vmem [#allocation1], 8
    %v38 = vld [vmem:[%s37] sm:$0xff]
    %vm39 = vcmask 64512
    %s40 = scalar_lea.vmem [#allocation0], 64
    %41 = vst.msk [vmem:[%s40] ss:$8 sm:$0xf] %vm39, %v38
    %s42 = scalar_lea.vmem [#allocation0], 64
    %43 = vst.msk [vmem:[%s42] ss:$8 sm:$0xf0] %vm39, %v38
    %v44 = vld [vmem:[#allocation1] sm:$0xff]
    %45 = vrot.lane.b32.xlu0 %v44, 120
    %v46 = vpop.permute.xlu0 %45
    %vm47 = vcmask 64512
    %s48 = scalar_lea.vmem [#allocation0], 1
    %49 = vst.msk [vmem:[%s48] ss:$8 sm:$0xf] %vm47, %v46
    %s50 = scalar_lea.vmem [#allocation0], 1
    %51 = vst.msk [vmem:[%s50] ss:$8 sm:$0xf0] %vm47, %v46
    %s52 = scalar_lea.vmem [#allocation1], 8
    %v53 = vld [vmem:[%s52] sm:$0xff]
    %54 = vrot.lane.b32.xlu0 %v53, 120
    %v55 = vpop.permute.xlu0 %54
    %vm56 = vcmask 64512
    %s57 = scalar_lea.vmem [#allocation0], 65
    %58 = vst.msk [vmem:[%s57] ss:$8 sm:$0xf] %vm56, %v55
    %s59 = scalar_lea.vmem [#allocation0], 65
    %60 = vst.msk [vmem:[%s59] ss:$8 sm:$0xf0] %vm56, %v55
    %v61 = vld [vmem:[#allocation1] sm:$0xff]
    %62 = vrot.lane.b32.xlu0 %v61, 112
    %v63 = vpop.permute.xlu0 %62
    %vm64 = vcmask 64512
    %s65 = scalar_lea.vmem [#allocation0], 2
    %66 = vst.msk [vmem:[%s65] ss:$8 sm:$0xf] %vm64, %v63
    %s67 = scalar_lea.vmem [#allocation0], 2
    %68 = vst.msk [vmem:[%s67] ss:$8 sm:$0xf0] %vm64, %v63
    %s69 = scalar_lea.vmem [#allocation1], 8
    %v70 = vld [vmem:[%s69] sm:$0xff]
    %71 = vrot.lane.b32.xlu0 %v70, 112
    %v72 = vpop.permute.xlu0 %71
    %vm73 = vcmask 64512
    %s74 = scalar_lea.vmem [#allocation0], 66
    %75 = vst.msk [vmem:[%s74] ss:$8 sm:$0xf] %vm73, %v72
    %s76 = scalar_lea.vmem [#allocation0], 66
    %77 = vst.msk [vmem:[%s76] ss:$8 sm:$0xf0] %vm73, %v72
    %v78 = vld [vmem:[#allocation1] sm:$0xff]
    %79 = vrot.lane.b32.xlu0 %v78, 104
    %v80 = vpop.permute.xlu0 %79
    %vm81 = vcmask 64512
    %s82 = scalar_lea.vmem [#allocation0], 3
    %83 = vst.msk [vmem:[%s82] ss:$8 sm:$0xf] %vm81, %v80
    %s84 = scalar_lea.vmem [#allocation0], 3
    %85 = vst.msk [vmem:[%s84] ss:$8 sm:$0xf0] %vm81, %v80
    %s86 = scalar_lea.vmem [#allocation1], 8
    %v87 = vld [vmem:[%s86] sm:$0xff]
    %88 = vrot.lane.b32.xlu0 %v87, 104
    %v89 = vpop.permute.xlu0 %88
    %vm90 = vcmask 64512
    %s91 = scalar_lea.vmem [#allocation0], 67
    %92 = vst.msk [vmem:[%s91] ss:$8 sm:$0xf] %vm90, %v89
    %s93 = scalar_lea.vmem [#allocation0], 67
    %94 = vst.msk [vmem:[%s93] ss:$8 sm:$0xf0] %vm90, %v89
    %s96 = smul.u32 2, 2
    %s97 = sshllo.u32 0, %s96
    %s98 = sshrl.u32 %s96, 1
    %v99 = vld [vmem:[#allocation0] sm:%s97]
    %v100 = vpack.c.bf16 0.0, %v99
    %s101 = sshllo.u32 0, %s98
    %102 = vst [vmem:[%s1] sm:%s101] %v100
    %s103 = scalar_lea.vmem [#allocation0], 8
    %v104 = vld [vmem:[%s103] sm:%s97]
    %v105 = vpack.c.bf16 0.0, %v104
    %s106 = sshllo.u32 0, %s98
    %s107 = scalar_lea.vmem %s1, 2
    %108 = vst [vmem:[%s107] sm:%s106] %v105
    %s109 = scalar_lea.vmem [#allocation0], 16
    %v110 = vld [vmem:[%s109] sm:%s97]
    %v111 = vpack.c.bf16 0.0, %v110
    %s112 = sshllo.u32 0, %s98
    %s113 = smul.addr 2, 2
    %s114 = scalar_lea.vmem %s1, %s113
    %115 = vst [vmem:[%s114] sm:%s112] %v111
    %s116 = scalar_lea.vmem [#allocation0], 24
    %v117 = vld [vmem:[%s116] sm:%s97]
    %v118 = vpack.c.bf16 0.0, %v117
    %s119 = sshllo.u32 0, %s98
    %s120 = smul.addr 2, 3
    %s121 = scalar_lea.vmem %s1, %s120
    %122 = vst [vmem:[%s121] sm:%s119] %v118
    %s123 = scalar_lea.vmem [#allocation0], 32
    %v124 = vld [vmem:[%s123] sm:%s97]
    %v125 = vpack.c.bf16 0.0, %v124
    %s126 = sshllo.u32 0, %s98
    %s127 = smul.addr 2, 4
    %s128 = scalar_lea.vmem %s1, %s127
    %129 = vst [vmem:[%s128] sm:%s126] %v125
    %s130 = scalar_lea.vmem [#allocation0], 40
    %v131 = vld [vmem:[%s130] sm:%s97]
    %v132 = vpack.c.bf16 0.0, %v131
    %s133 = sshllo.u32 0, %s98
    %s134 = smul.addr 2, 5
    %s135 = scalar_lea.vmem %s1, %s134
    %136 = vst [vmem:[%s135] sm:%s133] %v132
    %s137 = scalar_lea.vmem [#allocation0], 48
    %v138 = vld [vmem:[%s137] sm:%s97]
    %v139 = vpack.c.bf16 0.0, %v138
    %s140 = sshllo.u32 0, %s98
    %s141 = smul.addr 2, 6
    %s142 = scalar_lea.vmem %s1, %s141
    %143 = vst [vmem:[%s142] sm:%s140] %v139
    %s144 = scalar_lea.vmem [#allocation0], 56
    %v145 = vld [vmem:[%s144] sm:%s97]
    %v146 = vpack.c.bf16 0.0, %v145
    %s147 = sshllo.u32 0, %s98
    %s148 = smul.addr 2, 7
    %s149 = scalar_lea.vmem %s1, %s148
    %150 = vst [vmem:[%s149] sm:%s147] %v146
    %s151 = scalar_lea.vmem [#allocation0], 64
    %v152 = vld [vmem:[%s151] sm:%s97]
    %v153 = vpack.c.bf16 0.0, %v152
    %s154 = sshllo.u32 0, %s98
    %s155 = smul.addr 2, 8
    %s156 = scalar_lea.vmem %s1, %s155
    %157 = vst [vmem:[%s156] sm:%s154] %v153
    %s158 = scalar_lea.vmem [#allocation0], 72
    %v159 = vld [vmem:[%s158] sm:%s97]
    %v160 = vpack.c.bf16 0.0, %v159
    %s161 = sshllo.u32 0, %s98
    %s162 = smul.addr 2, 9
    %s163 = scalar_lea.vmem %s1, %s162
    %164 = vst [vmem:[%s163] sm:%s161] %v160
    %s165 = scalar_lea.vmem [#allocation0], 80
    %v166 = vld [vmem:[%s165] sm:%s97]
    %v167 = vpack.c.bf16 0.0, %v166
    %s168 = sshllo.u32 0, %s98
    %s169 = smul.addr 2, 10
    %s170 = scalar_lea.vmem %s1, %s169
    %171 = vst [vmem:[%s170] sm:%s168] %v167
    %s172 = scalar_lea.vmem [#allocation0], 88
    %v173 = vld [vmem:[%s172] sm:%s97]
    %v174 = vpack.c.bf16 0.0, %v173
    %s175 = sshllo.u32 0, %s98
    %s176 = smul.addr 2, 11
    %s177 = scalar_lea.vmem %s1, %s176
    %178 = vst [vmem:[%s177] sm:%s175] %v174
    %s179 = scalar_lea.vmem [#allocation0], 96
    %v180 = vld [vmem:[%s179] sm:%s97]
    %v181 = vpack.c.bf16 0.0, %v180
    %s182 = sshllo.u32 0, %s98
    %s183 = smul.addr 2, 12
    %s184 = scalar_lea.vmem %s1, %s183
    %185 = vst [vmem:[%s184] sm:%s182] %v181
    %s186 = scalar_lea.vmem [#allocation0], 104
    %v187 = vld [vmem:[%s186] sm:%s97]
    %v188 = vpack.c.bf16 0.0, %v187
    %s189 = sshllo.u32 0, %s98
    %s190 = smul.addr 2, 13
    %s191 = scalar_lea.vmem %s1, %s190
    %192 = vst [vmem:[%s191] sm:%s189] %v188
    %s193 = scalar_lea.vmem [#allocation0], 112
    %v194 = vld [vmem:[%s193] sm:%s97]
    %v195 = vpack.c.bf16 0.0, %v194
    %s196 = sshllo.u32 0, %s98
    %s197 = smul.addr 2, 14
    %s198 = scalar_lea.vmem %s1, %s197
    %199 = vst [vmem:[%s198] sm:%s196] %v195
    %s200 = scalar_lea.vmem [#allocation0], 120
    %v201 = vld [vmem:[%s200] sm:%s97]
    %v202 = vpack.c.bf16 0.0, %v201
    %s203 = sshllo.u32 0, %s98
    %s204 = smul.addr 2, 15
    %s205 = scalar_lea.vmem %s1, %s204
    %206 = vst [vmem:[%s205] sm:%s203] %v202

// kernel: multi_headed_attention.3
$region0: #{multi_headed_attention.3}
  #allocation0 [shape = 'u32[]', space=smem, size = 0x4, offset = 0x4, fixed_abs, tag = 'smem constant byte address 0x4 - core index']
  #allocation1 [shape = 'u32[144,128]{1,0:T(1,128)}', space=vmem, size = 0x12000, scoped, tag = 'internal scratch']
  #allocation2 [shape = 'f32[16,32]{1,0:T(8,128)}', space=vmem, size = 0x2000, scoped, tag = 'scratch operand']
  %s0 = inlined_call_operand.vmem [shape: bf16[3,16,32], index: 0, kind: input, shape index: {}]
  %s1 = inlined_call_operand.vmem [shape: bf16[3,32,32], index: 1, kind: input, shape index: {}]
  %s2 = inlined_call_operand.vmem [shape: f32[3,1,32], index: 2, kind: input, shape index: {}]
  %s3 = inlined_call_operand.vmem [shape: bf16[3,16,32], index: 3, kind: output, shape index: {}]
  %s4 = sld [smem:[#allocation0]]
  $region53: #{multi_headed_attention.3} parent=0
    _
  %s6 = ssub.s32 1, %s4
  %s7 = scalar_select 0, %s6, %s4
  loop: start=0, step=1, limit=5
  $region2: #{multi_headed_attention.3} parent=0 // loop_pre_header
    _
  $region3: #{multi_headed_attention.3} parent=0 // loop_header
    %s9 = sphi 0, %s13
    %p10 = scmp.ge.s32.totalorder %s9, 5
    %s16 = sphi 0, %s42
    %s17 = sphi 0, %s38
    %s18 = sphi 0, %s34
    %s19 = sphi 0, %s30
    %s20 = sphi 0, %s16
    %s21 = sphi 0, %s17
    %s22 = sphi 0, %s18
    %s23 = sphi 0, %s19
    %s24 = sphi 0, %s20
    %s25 = sphi 0, %s21
    %s26 = sphi 0, %s22
    %s27 = sphi 0, %s23
    %s49 = sphi 0, %s51
    %s52 = sphi 0, %s49
    %s53 = sphi 0, %s52
    %s69 = sphi 0, %s53
    %s79 = sphi 0, %s81
    %s82 = sphi 0, %s79
    %s83 = sphi 0, %s82
    %s99 = sphi 0, %s83
    %s107 = sphi 0, %s109
    %s110 = sphi 0, %s107
    %s111 = sphi 0, %s110
    %s127 = sphi 0, %s111
    %s137 = sphi 0, %s139
    %s140 = sphi 0, %s137
    %s141 = sphi 0, %s140
    %s157 = sphi 0, %s141
  $region4: #{multi_headed_attention.3} parent=0 // loop_header_branch
    %12 = sbr.rel (%p10) target = $region8
  $region5: #{multi_headed_attention.3} parent=0 // loop_body
    %s14 = ssub.s32 %s9, 1
    %s15 = ssub.s32 %s9, 2
    %s28 = sadd.s32 1, %s19
    %p29 = scmp.ge.s32.totalorder %s28, 1
    %s30 = scalar_select %p29, 0, %s28
    %s31 = sadd.s32 1, %s18
    %s32 = scalar_select %p29, %s31, %s18
    %p33 = scmp.ge.s32.totalorder %s32, 1
    %s34 = scalar_select %p33, 0, %s32
    %s35 = sadd.s32 1, %s17
    %s36 = scalar_select %p33, %s35, %s17
    %p37 = scmp.ge.s32.totalorder %s36, 1
    %s38 = scalar_select %p37, 0, %s36
    %s39 = sadd.s32 1, %s16
    %s40 = scalar_select %p37, %s39, %s16
    %p41 = scmp.ge.s32.totalorder %s40, 3
    %s42 = scalar_select %p41, 0, %s40
    %s43 = ssub.s32 %s16, %s42
    %s44 = ssub.s32 %s17, %s38
    %s45 = sor.u32 %s43, %s44
    %s46 = ssub.s32 %s19, %s30
    %s47 = sor.u32 %s45, %s46
    %p48 = scmp.eq.s32.totalorder %s47, 0
    %s50 = sadd.s32 %s49, 1
    %s51 = scalar_select %p48, %s49, %s50
    %p54 = pneg %p48
    %p55 = scmp.eq.s32.totalorder %s9, 2
    %p56 = por %p54, %p55
    %p57 = scmp.ne.s32.totalorder %s49, %s52
    %p58 = scmp.eq.s32.totalorder %s9, 0
    %p59 = por %p57, %p58
    %p60 = scmp.ne.s32.totalorder %s49, %s52
    %p61 = scmp.eq.s32.totalorder %s14, 2
    %p62 = por %p60, %p61
    %p63 = scmp.ne.s32.totalorder %s52, %s53
    %p64 = scmp.eq.s32.totalorder %s14, 0
    %p65 = por %p63, %p64
    %p66 = scmp.ne.s32.totalorder %s52, %s53
    %p67 = scmp.eq.s32.totalorder %s15, 2
    %p68 = por %p66, %p67
    %p70 = scmp.ne.s32.totalorder %s53, %s69
    %p71 = scmp.eq.s32.totalorder %s15, 0
    %p72 = por %p70, %p71
    %s73 = ssub.s32 %s16, %s42
    %s74 = ssub.s32 %s19, %s30
    %s75 = sor.u32 %s73, %s74
    %s76 = ssub.s32 %s18, %s34
    %s77 = sor.u32 %s75, %s76
    %p78 = scmp.eq.s32.totalorder %s77, 0
    %s80 = sadd.s32 %s79, 1
    %s81 = scalar_select %p78, %s79, %s80
    %p84 = pneg %p78
    %p85 = scmp.eq.s32.totalorder %s9, 2
    %p86 = por %p84, %p85
    %p87 = scmp.ne.s32.totalorder %s79, %s82
    %p88 = scmp.eq.s32.totalorder %s9, 0
    %p89 = por %p87, %p88
    %p90 = scmp.ne.s32.totalorder %s79, %s82
    %p91 = scmp.eq.s32.totalorder %s14, 2
    %p92 = por %p90, %p91
    %p93 = scmp.ne.s32.totalorder %s82, %s83
    %p94 = scmp.eq.s32.totalorder %s14, 0
    %p95 = por %p93, %p94
    %p96 = scmp.ne.s32.totalorder %s82, %s83
    %p97 = scmp.eq.s32.totalorder %s15, 2
    %p98 = por %p96, %p97
    %p100 = scmp.ne.s32.totalorder %s83, %s99
    %p101 = scmp.eq.s32.totalorder %s15, 0
    %p102 = por %p100, %p101
    %s103 = ssub.s32 %s16, %s42
    %s104 = ssub.s32 %s18, %s34
    %s105 = sor.u32 %s103, %s104
    %p106 = scmp.eq.s32.totalorder %s105, 0
    %s108 = sadd.s32 %s107, 1
    %s109 = scalar_select %p106, %s107, %s108
    %p112 = pneg %p106
    %p113 = scmp.eq.s32.totalorder %s9, 2
    %p114 = por %p112, %p113
    %p115 = scmp.ne.s32.totalorder %s107, %s110
    %p116 = scmp.eq.s32.totalorder %s9, 0
    %p117 = por %p115, %p116
    %p118 = scmp.ne.s32.totalorder %s107, %s110
    %p119 = scmp.eq.s32.totalorder %s14, 2
    %p120 = por %p118, %p119
    %p121 = scmp.ne.s32.totalorder %s110, %s111
    %p122 = scmp.eq.s32.totalorder %s14, 0
    %p123 = por %p121, %p122
    %p124 = scmp.ne.s32.totalorder %s110, %s111
    %p125 = scmp.eq.s32.totalorder %s15, 2
    %p126 = por %p124, %p125
    %p128 = scmp.ne.s32.totalorder %s111, %s127
    %p129 = scmp.eq.s32.totalorder %s15, 0
    %p130 = por %p128, %p129
    %s131 = ssub.s32 %s16, %s42
    %s132 = ssub.s32 %s17, %s38
    %s133 = sor.u32 %s131, %s132
    %s134 = ssub.s32 %s18, %s34
    %s135 = sor.u32 %s133, %s134
    %p136 = scmp.eq.s32.totalorder %s135, 0
    %s138 = sadd.s32 %s137, 1
    %s139 = scalar_select %p136, %s137, %s138
    %p142 = pneg %p136
    %p143 = scmp.eq.s32.totalorder %s9, 2
    %p144 = por %p142, %p143
    %p145 = scmp.ne.s32.totalorder %s137, %s140
    %p146 = scmp.eq.s32.totalorder %s9, 0
    %p147 = por %p145, %p146
    %p148 = scmp.ne.s32.totalorder %s137, %s140
    %p149 = scmp.eq.s32.totalorder %s14, 2
    %p150 = por %p148, %p149
    %p151 = scmp.ne.s32.totalorder %s140, %s141
    %p152 = scmp.eq.s32.totalorder %s14, 0
    %p153 = por %p151, %p152
    %p154 = scmp.ne.s32.totalorder %s140, %s141
    %p155 = scmp.eq.s32.totalorder %s15, 2
    %p156 = por %p154, %p155
    %p158 = scmp.ne.s32.totalorder %s141, %s157
    %p159 = scmp.eq.s32.totalorder %s15, 0
    %p160 = por %p158, %p159
    %p161 = scmp.le.s32.totalorder 1, %s9
    %p162 = scmp.lt.s32.totalorder %s9, 4
    %p163 = pnand %p161, %p162
    %p164 = pneg %p163
    // Predicated region
    $region9: #{multi_headed_attention.3} parent=5 // pred_check
      _
    $region10: #{multi_headed_attention.3} parent=5 // pred_check_branch
      %166 = sbr.rel (%p163) target = $region12
    $region11: #{multi_headed_attention.3} parent=5 // pred_region
      %s167 = ssub.s32 %s9, 1
    $region12: #{multi_headed_attention.3} parent=5 // pred_fallthru
      _
    %p168 = scmp.lt.s32.totalorder %s9, 3
    // Predicated region
    $region13: #{multi_headed_attention.3} parent=5 // pred_check
      %p169 = pneg %p168
    $region14: #{multi_headed_attention.3} parent=5 // pred_check_branch
      %171 = sbr.rel (%p169) target = $region16
    $region15: #{multi_headed_attention.3} parent=5 // pred_region
      // Predicated region
      $region17: #{multi_headed_attention.3} parent=15 // pred_check
        %p172 = pneg %p59
      $region18: #{multi_headed_attention.3} parent=15 // pred_check_branch
        %174 = sbr.rel (%p172) target = $region20
      $region19: #{multi_headed_attention.3} parent=15 // pred_region
        %s175 = smul.u32 2, %s17
        %p176 = scmp.lt.s32.totalorder %s16, 2
        %s177 = scalar_select %p176, %s16, 2
        %p178 = scmp.lt.s32.totalorder %s175, 1
        %s179 = scalar_select %p178, %s175, 1
        %p180 = scmp.lt.s32.totalorder %s19, 0
        %s181 = scalar_select %p180, %s19, 0
        %s182 = sadd.s32 %s181, %s179
        %s183 = smul.addr %s177, 2
        %s184 = sadd.s32 %s182, %s183
        %s185 = smul.addr %s184, 4
        %s186 = scalar_lea.vmem %s0, %s185
        %s187 = smul.u32 2, %s17
      $region20: #{multi_headed_attention.3} parent=15 // pred_fallthru
        _
      // Predicated region
      $region21: #{multi_headed_attention.3} parent=15 // pred_check
        %p188 = pneg %p89
      $region22: #{multi_headed_attention.3} parent=15 // pred_check_branch
        %190 = sbr.rel (%p188) target = $region24
      $region23: #{multi_headed_attention.3} parent=15 // pred_region
        %s191 = smul.u32 4, %s19
        %p192 = scmp.lt.s32.totalorder %s16, 2
        %s193 = scalar_select %p192, %s16, 2
        %p194 = scmp.lt.s32.totalorder %s191, 3
        %s195 = scalar_select %p194, %s191, 3
        %p196 = scmp.lt.s32.totalorder %s18, 0
        %s197 = scalar_select %p196, %s18, 0
        %s198 = sadd.s32 %s197, %s195
        %s199 = smul.addr %s193, 4
        %s200 = sadd.s32 %s198, %s199
        %s201 = smul.addr %s200, 4
        %s202 = scalar_lea.vmem %s1, %s201
        %s203 = smul.u32 4, %s19
      $region24: #{multi_headed_attention.3} parent=15 // pred_fallthru
        _
      // Predicated region
      $region25: #{multi_headed_attention.3} parent=15 // pred_check
        %p204 = pneg %p117
      $region26: #{multi_headed_attention.3} parent=15 // pred_check_branch
        %206 = sbr.rel (%p204) target = $region28
      $region27: #{multi_headed_attention.3} parent=15 // pred_region
        %p207 = scmp.lt.s32.totalorder %s16, 2
        %s208 = scalar_select %p207, %s16, 2
        %p209 = scmp.lt.s32.totalorder %s18, 0
        %s210 = scalar_select %p209, %s18, 0
        %s211 = sadd.s32 %s210, %s208
        %s212 = scalar_lea.vmem %s2, %s211
      $region28: #{multi_headed_attention.3} parent=15 // pred_fallthru
        _
    $region16: #{multi_headed_attention.3} parent=5 // pred_fallthru
      _
    %p213 = scmp.le.s32.totalorder 1, %s9
    %p214 = scmp.lt.s32.totalorder %s9, 4
    %p215 = pnand %p213, %p214
    %p216 = pneg %p215
    // Predicated region
    $region29: #{multi_headed_attention.3} parent=5 // pred_check
      _
    $region30: #{multi_headed_attention.3} parent=5 // pred_check_branch
      %218 = sbr.rel (%p215) target = $region32
    $region31: #{multi_headed_attention.3} parent=5 // pred_region
      %s219 = ssub.s32 %s9, 1
      %s220 = smul.u32 2, %s21
      %p221 = scmp.lt.s32.totalorder %s20, 2
      %s222 = scalar_select %p221, %s20, 2
      %p223 = scmp.lt.s32.totalorder %s220, 1
      %s224 = scalar_select %p223, %s220, 1
      %p225 = scmp.lt.s32.totalorder %s23, 0
      %s226 = scalar_select %p225, %s23, 0
      %s227 = sadd.s32 %s226, %s224
      %s228 = smul.addr %s222, 2
      %s229 = sadd.s32 %s227, %s228
      %s230 = smul.addr %s229, 4
      %s231 = scalar_lea.vmem %s0, %s230
      %p232 = pneg %p65
      %p233 = pneg %p62
      %s234 = smul.u32 4, %s23
      %p235 = scmp.lt.s32.totalorder %s20, 2
      %s236 = scalar_select %p235, %s20, 2
      %p237 = scmp.lt.s32.totalorder %s234, 3
      %s238 = scalar_select %p237, %s234, 3
      %p239 = scmp.lt.s32.totalorder %s22, 0
      %s240 = scalar_select %p239, %s22, 0
      %s241 = sadd.s32 %s240, %s238
      %s242 = smul.addr %s236, 4
      %s243 = sadd.s32 %s241, %s242
      %s244 = smul.addr %s243, 4
      %s245 = scalar_lea.vmem %s1, %s244
      %p246 = pneg %p95
      %p247 = pneg %p92
      %p248 = scmp.lt.s32.totalorder %s20, 2
      %s249 = scalar_select %p248, %s20, 2
      %p250 = scmp.lt.s32.totalorder %s22, 0
      %s251 = scalar_select %p250, %s22, 0
      %s252 = sadd.s32 %s251, %s249
      %s253 = scalar_lea.vmem %s2, %s252
      %p254 = pneg %p123
      %p255 = pneg %p120
      %p256 = pneg %p153
      %p257 = pneg %p150
      %s258 = smul.u32 2, %s21
      %p259 = scmp.lt.s32.totalorder %s20, 2
      %s260 = scalar_select %p259, %s20, 2
      %p261 = scmp.lt.s32.totalorder %s258, 1
      %s262 = scalar_select %p261, %s258, 1
      %p263 = scmp.lt.s32.totalorder %s22, 0
      %s264 = scalar_select %p263, %s22, 0
      %s265 = sadd.s32 %s264, %s262
      %s266 = smul.addr %s260, 2
      %s267 = sadd.s32 %s265, %s266
      %s268 = smul.addr %s267, 4
      %s269 = scalar_lea.vmem %s3, %s268
      %s270 = smul.u32 2, %s21
      %p271 = scmp.lt.s32.totalorder %s20, 2
      %s272 = scalar_select %p271, %s20, 2
      %p273 = scmp.lt.s32.totalorder %s270, 1
      %s274 = scalar_select %p273, %s270, 1
      %p275 = scmp.lt.s32.totalorder %s23, 0
      %s276 = scalar_select %p275, %s23, 0
      %s277 = sadd.s32 %s276, %s274
      %s278 = smul.addr %s272, 2
      %s279 = sadd.s32 %s277, %s278
      %s280 = smul.addr %s279, 4
      %s281 = scalar_lea.vmem %s0, %s280
      %s282 = smul.u32 2, %s21
      %s283 = smul.u32 4, %s23
      %p284 = scmp.lt.s32.totalorder %s20, 2
      %s285 = scalar_select %p284, %s20, 2
      %p286 = scmp.lt.s32.totalorder %s283, 3
      %s287 = scalar_select %p286, %s283, 3
      %p288 = scmp.lt.s32.totalorder %s22, 0
      %s289 = scalar_select %p288, %s22, 0
      %s290 = sadd.s32 %s289, %s287
      %s291 = smul.addr %s285, 4
      %s292 = sadd.s32 %s290, %s291
      %s293 = smul.addr %s292, 4
      %s294 = scalar_lea.vmem %s1, %s293
      %s295 = smul.u32 4, %s23
      %p296 = scmp.lt.s32.totalorder %s20, 2
      %s297 = scalar_select %p296, %s20, 2
      %p298 = scmp.lt.s32.totalorder %s22, 0
      %s299 = scalar_select %p298, %s22, 0
      %s300 = sadd.s32 %s299, %s297
      %s301 = scalar_lea.vmem %s2, %s300
      %s302 = smul.u32 2, %s21
      %p303 = scmp.lt.s32.totalorder %s20, 2
      %s304 = scalar_select %p303, %s20, 2
      %p305 = scmp.lt.s32.totalorder %s302, 1
      %s306 = scalar_select %p305, %s302, 1
      %p307 = scmp.lt.s32.totalorder %s22, 0
      %s308 = scalar_select %p307, %s22, 0
      %s309 = sadd.s32 %s308, %s306
      %s310 = smul.addr %s304, 2
      %s311 = sadd.s32 %s309, %s310
      %s312 = smul.addr %s311, 4
      %s313 = scalar_lea.vmem %s3, %s312
      %s314 = smul.u32 2, %s21
      %p316 = scmp.eq.s32.totalorder %s23, 0
      // Predicated region
      $region33: #{multi_headed_attention.3} parent=31 // pred_check
        %p317 = pneg %p316
      $region34: #{multi_headed_attention.3} parent=31 // pred_check_branch
        %319 = sbr.rel (%p317) target = $region36
      $region35: #{multi_headed_attention.3} parent=31 // pred_region
        %vm320 = vcmask 261120
        %321 = vst.msk [vmem:[#allocation2] sm:$0xff] %vm320, 0.0
        %322 = vst.msk [vmem:[#allocation2 + $0x8] sm:$0xff] %vm320, 0.0
      $region36: #{multi_headed_attention.3} parent=31 // pred_fallthru
        _
      %v323 = vld [vmem:[#allocation2] sm:$0xff]
      %v324 = vld [vmem:[#allocation2 + $0x8] sm:$0xff]
      %v325 = vld [vmem:[%s281] sm:$0xf]
      %v326 = vld [vmem:[%s281 + $0x4] sm:$0xf]
      %v327 = vld [vmem:[%s294] sm:$0xf]
      %v328 = vld [vmem:[%s294 + $0x4] sm:$0xf]
      %v329 = vld [vmem:[%s294 + $0x8] sm:$0xf]
      %v330 = vld [vmem:[%s294 + $0xc] sm:$0xf]
      %v333 = vunpack.c.l.b16 %v325
      %v334 = vunpack.c.l.b16 %v326
      %v335 = vpack.c.b16 %v334, %v333
      %v340 = vunpack.c.l.b16 %v327
      %v341 = vunpack.c.l.b16 %v328
      %v342 = vunpack.c.l.b16 %v329
      %v343 = vunpack.c.l.b16 %v330
      %v344 = vpack.c.b16 %v341, %v340
      %v345 = vpack.c.b16 %v343, %v342
      %vm348 = vcmask 261120
      %v350 = vsel %vm348, %v335, 0
      %352 = vmatprep.subr.bf16.mxu0 0
      %353 = vmatpush1.bf16.msra.mxu0 %v344
      %354 = vmatprep.subr.bf16.mxu0 0
      %355 = vmatpush1.bf16.msra.mxu0 %v345
      %356 = vmatprep.subr.bf16.mxu0 0
      %357 = vmatpush1.bf16.msra.mxu0 0
      %358 = vmatprep.subr.bf16.mxu0 0
      %359 = vmatpush1.bf16.msra.mxu0 0
      %360 = vmatprep.subr.bf16.mxu0 0
      %361 = vmatpush1.bf16.msra.mxu0 0
      %362 = vmatprep.subr.bf16.mxu0 0
      %363 = vmatpush1.bf16.msra.mxu0 0
      %364 = vmatprep.subr.bf16.mxu0 0
      %365 = vmatpush1.bf16.msra.mxu0 0
      %366 = vmatprep.subr.bf16.mxu0 0
      %367 = vmatpush1.bf16.msra.mxu0 0
      %368 = vmatprep.subr.bf16.mxu0 0
      %369 = vmatpush1.bf16.msra.mxu0 0
      %370 = vmatprep.subr.bf16.mxu0 0
      %371 = vmatpush1.bf16.msra.mxu0 0
      %372 = vmatprep.subr.bf16.mxu0 0
      %373 = vmatpush1.bf16.msra.mxu0 0
      %374 = vmatprep.subr.bf16.mxu0 0
      %375 = vmatpush1.bf16.msra.mxu0 0
      %376 = vmatprep.subr.bf16.mxu0 0
      %377 = vmatpush1.bf16.msra.mxu0 0
      %378 = vmatprep.subr.bf16.mxu0 0
      %379 = vmatpush1.bf16.msra.mxu0 0
      %380 = vmatprep.subr.bf16.mxu0 0
      %381 = vmatpush1.bf16.msra.mxu0 0
      %382 = vmatprep.subr.bf16.mxu0 0
      %383 = vmatpush1.bf16.msra.mxu0 0
      %384 = vmatprep.mubr.bf16.mxu0 0
      %385 = vmatmul.mubr.bf16.gmra.mrb[0].mxu0 %v350
      %v386 = vpop.f32.mrb[0].mxu0
      %v387 = vadd.f32 0.0, %v386
      %v388 = vpop.f32.mrb[0].mxu0
      %v389 = vpop.f32.mrb[0].mxu0
      %v390 = vadd.f32 0.0, %v389
      %v391 = vpop.f32.mrb[0].mxu0
      %392 = vdwg.mxu0
      %v393 = vadd.f32 %v323, %v387
      %v394 = vadd.f32 %v324, %v390
      %395 = vst.msk [vmem:[#allocation2] sm:$0xff] %vm348, %v393
      %396 = vst.msk [vmem:[#allocation2 + $0x8] sm:$0xff] %vm348, %v394
      // Predicated region
      $region37: #{multi_headed_attention.3} parent=31 // pred_check
        %p397 = pneg %p316
      $region38: #{multi_headed_attention.3} parent=31 // pred_check_branch
        %399 = sbr.rel (%p397) target = $region40
      $region39: #{multi_headed_attention.3} parent=31 // pred_region
        %v400 = vld [vmem:[#allocation2] sm:$0xff]
        %v401 = vld [vmem:[#allocation2 + $0x8] sm:$0xff]
        %v402 = vld [vmem:[%s301] sm:$0x1]
        %v404 = vlaneseq
        %v405 = vshrl.u32 %v404, 7
        %v406 = vsub.s32 0, %v405
        %v407 = vrot.slane %v402, %v406
        %v409 = vadd.f32 %v400, %v407
        %v410 = vadd.f32 %v401, %v407
        %v411 = vpack.c.bf16 %v410, %v409
        %v413 = vunpack.c.l.b16 %v411
        %v414 = vunpack.c.h.b16 %v411
        %v415 = vpack.c.b16 %v413, %v413
        %v416 = vpack.c.b16 %v414, %v414
        %vm419 = vcmask 257024
        %420 = vst.msk [vmem:[%s313] sm:$0xf] %vm419, %v415
        %421 = vst.msk [vmem:[%s313 + $0x4] sm:$0xf] %vm419, %v416
      $region40: #{multi_headed_attention.3} parent=31 // pred_fallthru
        _
      %s422 = smul.u32 2, %s21
      %p423 = scmp.lt.s32.totalorder %s20, 2
      %s424 = scalar_select %p423, %s20, 2
      %p425 = scmp.lt.s32.totalorder %s422, 1
      %s426 = scalar_select %p425, %s422, 1
      %p427 = scmp.lt.s32.totalorder %s22, 0
      %s428 = scalar_select %p427, %s22, 0
      %s429 = sadd.s32 %s428, %s426
      %s430 = smul.addr %s424, 2
      %s431 = sadd.s32 %s429, %s430
      %s432 = smul.addr %s431, 4
      %s433 = scalar_lea.vmem %s3, %s432
      // Predicated region
      $region41: #{multi_headed_attention.3} parent=31 // pred_check
        %p434 = pneg %p150
      $region42: #{multi_headed_attention.3} parent=31 // pred_check_branch
        %436 = sbr.rel (%p434) target = $region44
      $region43: #{multi_headed_attention.3} parent=31 // pred_region
        %s437 = smul.u32 2, %s21
      $region44: #{multi_headed_attention.3} parent=31 // pred_fallthru
        _
    $region32: #{multi_headed_attention.3} parent=5 // pred_fallthru
      _
    %p438 = scmp.le.s32.totalorder 2, %s9
    // Predicated region
    $region45: #{multi_headed_attention.3} parent=5 // pred_check
      %p439 = pneg %p438
    $region46: #{multi_headed_attention.3} parent=5 // pred_check_branch
      %441 = sbr.rel (%p439) target = $region48
    $region47: #{multi_headed_attention.3} parent=5 // pred_region
      %s442 = ssub.s32 %s9, 2
      // Predicated region
      $region49: #{multi_headed_attention.3} parent=47 // pred_check
        %p443 = pneg %p156
      $region50: #{multi_headed_attention.3} parent=47 // pred_check_branch
        %445 = sbr.rel (%p443) target = $region52
      $region51: #{multi_headed_attention.3} parent=47 // pred_region
        %s446 = smul.u32 2, %s25
        %p447 = scmp.lt.s32.totalorder %s24, 2
        %s448 = scalar_select %p447, %s24, 2
        %p449 = scmp.lt.s32.totalorder %s446, 1
        %s450 = scalar_select %p449, %s446, 1
        %p451 = scmp.lt.s32.totalorder %s26, 0
        %s452 = scalar_select %p451, %s26, 0
        %s453 = sadd.s32 %s452, %s450
        %s454 = smul.addr %s448, 2
        %s455 = sadd.s32 %s453, %s454
        %s456 = smul.addr %s455, 4
        %s457 = scalar_lea.vmem %s3, %s456
      $region52: #{multi_headed_attention.3} parent=47 // pred_fallthru
        _
    $region48: #{multi_headed_attention.3} parent=5 // pred_fallthru
      _
  $region6: #{multi_headed_attention.3} parent=0 // loop_footer
    %s13 = sadd.s32 1, %s9
  $region7: #{multi_headed_attention.3} parent=0 // loop_footer_branch
    %8 = sbr.rel target = $region3
  $region8: #{multi_headed_attention.3} parent=0 // loop_exit
    _

// kernel: multi_headed_attention.5
$region0: #{multi_headed_attention.5}
  #allocation0 [shape = 'u32[]', space=smem, size = 0x4, offset = 0x4, fixed_abs, tag = 'smem constant byte address 0x4 - core index']
  #allocation1 [shape = 'u32[144,128]{1,0:T(1,128)}', space=vmem, size = 0x12000, scoped, tag = 'internal scratch']
  #allocation2 [shape = 'f32[16,32]{1,0:T(8,128)}', space=vmem, size = 0x2000, scoped, tag = 'scratch operand']
  %s0 = inlined_call_operand.vmem [shape: bf16[1,16,32], index: 0, kind: input, shape index: {}]
  %s1 = inlined_call_operand.vmem [shape: bf16[1,32,32], index: 1, kind: input, shape index: {}]
  %s2 = inlined_call_operand.vmem [shape: f32[1,1,32], index: 2, kind: input, shape index: {}]
  %s3 = inlined_call_operand.hbm [shape: f32[1,16,32], index: 3, kind: output, shape index: {}]
  %s4 = sld [smem:[#allocation0]]
  $region30: #{multi_headed_attention.5} parent=0
    _
  %s6 = ssub.s32 1, %s4
  %s7 = scalar_select 0, %s6, %s4
  $region1: #{multi_headed_attention.5} parent=0
    #allocation3 [shape = 'u8[8192]{0}', space=vmem, size = 0x2000, scoped, tag = 'output window, operand 0, single buffered']
    #allocation4 [shape = 's32[1]{0}', space=sflag, size = 0x4, scoped, tag = 'scoped memory for multi_headed_attention.5']
    %8 = vsyncpa [#allocation4], 0
    // Predicated region
    $region2: #{multi_headed_attention.5} parent=1 // pred_check
      _
    $region3: #{multi_headed_attention.5} parent=1 // pred_check_branch
      %10 = sbr.rel (0) target = $region5
    $region4: #{multi_headed_attention.5} parent=1 // pred_region
      _
    $region5: #{multi_headed_attention.5} parent=1 // pred_fallthru
      _
    // Predicated region
    $region6: #{multi_headed_attention.5} parent=1 // pred_check
      _
    $region7: #{multi_headed_attention.5} parent=1 // pred_check_branch
      %12 = sbr.rel (0) target = $region9
    $region8: #{multi_headed_attention.5} parent=1 // pred_region
      _
    $region9: #{multi_headed_attention.5} parent=1 // pred_fallthru
      _
    // Predicated region
    $region10: #{multi_headed_attention.5} parent=1 // pred_check
      _
    $region11: #{multi_headed_attention.5} parent=1 // pred_check_branch
      %14 = sbr.rel (0) target = $region13
    $region12: #{multi_headed_attention.5} parent=1 // pred_region
      _
    $region13: #{multi_headed_attention.5} parent=1 // pred_fallthru
      _
    %p16 = scmp.eq.s32.totalorder 0, 0
    // Predicated region
    $region14: #{multi_headed_attention.5} parent=1 // pred_check
      %p17 = pneg %p16
    $region15: #{multi_headed_attention.5} parent=1 // pred_check_branch
      %19 = sbr.rel (%p17) target = $region17
    $region16: #{multi_headed_attention.5} parent=1 // pred_region
      %vm20 = vcmask 261120
      %21 = vst.msk [vmem:[#allocation2] sm:$0xff] %vm20, 0.0
      %22 = vst.msk [vmem:[#allocation2 + $0x8] sm:$0xff] %vm20, 0.0
    $region17: #{multi_headed_attention.5} parent=1 // pred_fallthru
      _
    %v23 = vld [vmem:[#allocation2] sm:$0xff]
    %v24 = vld [vmem:[#allocation2 + $0x8] sm:$0xff]
    %v25 = vld [vmem:[%s0] sm:$0xf]
    %v26 = vld [vmem:[%s0 + $0x4] sm:$0xf]
    %v27 = vld [vmem:[%s1] sm:$0xf]
    %v28 = vld [vmem:[%s1 + $0x4] sm:$0xf]
    %v29 = vld [vmem:[%s1 + $0x8] sm:$0xf]
    %v30 = vld [vmem:[%s1 + $0xc] sm:$0xf]
    %v33 = vunpack.c.l.b16 %v25
    %v34 = vunpack.c.l.b16 %v26
    %v35 = vpack.c.b16 %v34, %v33
    %v40 = vunpack.c.l.b16 %v27
    %v41 = vunpack.c.l.b16 %v28
    %v42 = vunpack.c.l.b16 %v29
    %v43 = vunpack.c.l.b16 %v30
    %v44 = vpack.c.b16 %v41, %v40
    %v45 = vpack.c.b16 %v43, %v42
    %vm48 = vcmask 261120
    %v50 = vsel %vm48, %v35, 0
    %52 = vmatprep.subr.bf16.mxu0 0
    %53 = vmatpush1.bf16.msra.mxu0 %v44
    %54 = vmatprep.subr.bf16.mxu0 0
    %55 = vmatpush1.bf16.msra.mxu0 %v45
    %56 = vmatprep.subr.bf16.mxu0 0
    %57 = vmatpush1.bf16.msra.mxu0 0
    %58 = vmatprep.subr.bf16.mxu0 0
    %59 = vmatpush1.bf16.msra.mxu0 0
    %60 = vmatprep.subr.bf16.mxu0 0
    %61 = vmatpush1.bf16.msra.mxu0 0
    %62 = vmatprep.subr.bf16.mxu0 0
    %63 = vmatpush1.bf16.msra.mxu0 0
    %64 = vmatprep.subr.bf16.mxu0 0
    %65 = vmatpush1.bf16.msra.mxu0 0
    %66 = vmatprep.subr.bf16.mxu0 0
    %67 = vmatpush1.bf16.msra.mxu0 0
    %68 = vmatprep.subr.bf16.mxu0 0
    %69 = vmatpush1.bf16.msra.mxu0 0
    %70 = vmatprep.subr.bf16.mxu0 0
    %71 = vmatpush1.bf16.msra.mxu0 0
    %72 = vmatprep.subr.bf16.mxu0 0
    %73 = vmatpush1.bf16.msra.mxu0 0
    %74 = vmatprep.subr.bf16.mxu0 0
    %75 = vmatpush1.bf16.msra.mxu0 0
    %76 = vmatprep.subr.bf16.mxu0 0
    %77 = vmatpush1.bf16.msra.mxu0 0
    %78 = vmatprep.subr.bf16.mxu0 0
    %79 = vmatpush1.bf16.msra.mxu0 0
    %80 = vmatprep.subr.bf16.mxu0 0
    %81 = vmatpush1.bf16.msra.mxu0 0
    %82 = vmatprep.subr.bf16.mxu0 0
    %83 = vmatpush1.bf16.msra.mxu0 0
    %84 = vmatprep.mubr.bf16.mxu0 0
    %85 = vmatmul.mubr.bf16.gmra.mrb[0].mxu0 %v50
    %v86 = vpop.f32.mrb[0].mxu0
    %v87 = vadd.f32 0.0, %v86
    %v88 = vpop.f32.mrb[0].mxu0
    %v89 = vpop.f32.mrb[0].mxu0
    %v90 = vadd.f32 0.0, %v89
    %v91 = vpop.f32.mrb[0].mxu0
    %92 = vdwg.mxu0
    %v93 = vadd.f32 %v23, %v87
    %v94 = vadd.f32 %v24, %v90
    %95 = vst.msk [vmem:[#allocation2] sm:$0xff] %vm48, %v93
    %96 = vst.msk [vmem:[#allocation2 + $0x8] sm:$0xff] %vm48, %v94
    // Predicated region
    $region18: #{multi_headed_attention.5} parent=1 // pred_check
      %p97 = pneg %p16
    $region19: #{multi_headed_attention.5} parent=1 // pred_check_branch
      %99 = sbr.rel (%p97) target = $region21
    $region20: #{multi_headed_attention.5} parent=1 // pred_region
      %v100 = vld [vmem:[#allocation2] sm:$0xff]
      %v101 = vld [vmem:[#allocation2 + $0x8] sm:$0xff]
      %v102 = vld [vmem:[%s2] sm:$0x1]
      %v104 = vlaneseq
      %v105 = vshrl.u32 %v104, 7
      %v106 = vsub.s32 0, %v105
      %v107 = vrot.slane %v102, %v106
      %v109 = vadd.f32 %v100, %v107
      %v110 = vadd.f32 %v101, %v107
      %111 = vst.msk [vmem:[#allocation3] sm:$0xff] %vm48, %v109
      %112 = vst.msk [vmem:[#allocation3 + $0x8] sm:$0xff] %vm48, %v110
    $region21: #{multi_headed_attention.5} parent=1 // pred_fallthru
      _
    // Predicated region
    $region22: #{multi_headed_attention.5} parent=1 // pred_check
      _
    $region23: #{multi_headed_attention.5} parent=1 // pred_check_branch
      %114 = sbr.rel (0) target = $region25
    $region24: #{multi_headed_attention.5} parent=1 // pred_region
      %s116 = ssub.s32 256, 256
      %117 = vsyncadd [#allocation4], %s116
      %s118 = sshll.u32 [#allocation3], 4
      %s119 = int_to_ptr.vmem [resolvable:$true] %s118
      %124 = dma.vmem_to_hbm [thread:$0]  %s119, 256, %s3, [#allocation4], 128, 128, 8
    $region25: #{multi_headed_attention.5} parent=1 // pred_fallthru
      _
    // Predicated region
    $region26: #{multi_headed_attention.5} parent=1 // pred_check
      _
    $region27: #{multi_headed_attention.5} parent=1 // pred_check_branch
      %126 = sbr.rel (0) target = $region29
    $region28: #{multi_headed_attention.5} parent=1 // pred_region
      %127 = dma.done [#allocation4], 256
    $region29: #{multi_headed_attention.5} parent=1 // pred_fallthru
      _
    %128 = vsyncpa [#allocation4], 1

// kernel: multi_headed_attention.4
$region0: #{multi_headed_attention.4}
  #allocation0 [shape = 'u32[]', space=smem, size = 0x4, offset = 0x4, fixed_abs, tag = 'smem constant byte address 0x4 - core index']
  #allocation1 [shape = 'u32[144,128]{1,0:T(1,128)}', space=vmem, size = 0x12000, scoped, tag = 'internal scratch']
  #allocation2 [shape = 'f32[8,8,1]{2,1,0:T(8,128)}', space=vmem, size = 0x8000, scoped, tag = 'scratch operand']
  #allocation3 [shape = 'f32[8,8,1]{2,1,0:T(8,128)}', space=vmem, size = 0x8000, scoped, tag = 'scratch operand']
  #allocation4 [shape = 'f32[8,8,8]{2,1,0:T(8,128)}', space=vmem, size = 0x8000, scoped, tag = 'scratch operand']
  %s0 = inlined_call_operand.vmem [shape: bf16[8,8,8], index: 0, kind: input, shape index: {}]
  %s1 = inlined_call_operand.vmem [shape: bf16[8,8,8], index: 1, kind: input, shape index: {}]
  %s2 = inlined_call_operand.vmem [shape: bf16[8,8,8], index: 2, kind: input, shape index: {}]
  %s3 = inlined_call_operand.vmem [shape: bf16[8,8,8], index: 3, kind: output, shape index: {}]
  %s4 = sld [smem:[#allocation0]]
  $region30: #{multi_headed_attention.4} parent=0
    _
  %s6 = ssub.s32 1, %s4
  %s7 = scalar_select 0, %s6, %s4
  // Predicated region
  $region2: #{multi_headed_attention.4} parent=0 // pred_check
    _
  $region3: #{multi_headed_attention.4} parent=0 // pred_check_branch
    %9 = sbr.rel (0) target = $region5
  $region4: #{multi_headed_attention.4} parent=0 // pred_region
    _
  $region5: #{multi_headed_attention.4} parent=0 // pred_fallthru
    _
  // Predicated region
  $region6: #{multi_headed_attention.4} parent=0 // pred_check
    _
  $region7: #{multi_headed_attention.4} parent=0 // pred_check_branch
    %11 = sbr.rel (0) target = $region9
  $region8: #{multi_headed_attention.4} parent=0 // pred_region
    _
  $region9: #{multi_headed_attention.4} parent=0 // pred_fallthru
    _
  // Predicated region
  $region10: #{multi_headed_attention.4} parent=0 // pred_check
    _
  $region11: #{multi_headed_attention.4} parent=0 // pred_check_branch
    %13 = sbr.rel (0) target = $region13
  $region12: #{multi_headed_attention.4} parent=0 // pred_region
    _
  $region13: #{multi_headed_attention.4} parent=0 // pred_fallthru
    _
  %p15 = scmp.eq.s32.totalorder 0, 0
  // Predicated region
  $region14: #{multi_headed_attention.4} parent=0 // pred_check
    %p16 = pneg %p15
  $region15: #{multi_headed_attention.4} parent=0 // pred_check_branch
    %18 = sbr.rel (%p16) target = $region17
  $region16: #{multi_headed_attention.4} parent=0 // pred_region
    %vm19 = vcmask 7168
    %20 = vst.msk [vmem:[#allocation2] sm:$0xff] %vm19, -inf
    %21 = vst.msk [vmem:[#allocation2 + $0x8] sm:$0xff] %vm19, -inf
    %22 = vst.msk [vmem:[#allocation2 + $0x10] sm:$0xff] %vm19, -inf
    %23 = vst.msk [vmem:[#allocation2 + $0x18] sm:$0xff] %vm19, -inf
    %24 = vst.msk [vmem:[#allocation2 + $0x20] sm:$0xff] %vm19, -inf
    %25 = vst.msk [vmem:[#allocation2 + $0x28] sm:$0xff] %vm19, -inf
    %26 = vst.msk [vmem:[#allocation2 + $0x30] sm:$0xff] %vm19, -inf
    %27 = vst.msk [vmem:[#allocation2 + $0x38] sm:$0xff] %vm19, -inf
    %28 = vst.msk [vmem:[#allocation3] sm:$0xff] %vm19, 0.0
    %29 = vst.msk [vmem:[#allocation3 + $0x8] sm:$0xff] %vm19, 0.0
    %30 = vst.msk [vmem:[#allocation3 + $0x10] sm:$0xff] %vm19, 0.0
    %31 = vst.msk [vmem:[#allocation3 + $0x18] sm:$0xff] %vm19, 0.0
    %32 = vst.msk [vmem:[#allocation3 + $0x20] sm:$0xff] %vm19, 0.0
    %33 = vst.msk [vmem:[#allocation3 + $0x28] sm:$0xff] %vm19, 0.0
    %34 = vst.msk [vmem:[#allocation3 + $0x30] sm:$0xff] %vm19, 0.0
    %35 = vst.msk [vmem:[#allocation3 + $0x38] sm:$0xff] %vm19, 0.0
    %vm36 = vcmask 64512
    %37 = vst.msk [vmem:[#allocation4] sm:$0xff] %vm36, 0.0
    %38 = vst.msk [vmem:[#allocation4 + $0x8] sm:$0xff] %vm36, 0.0
    %39 = vst.msk [vmem:[#allocation4 + $0x10] sm:$0xff] %vm36, 0.0
    %40 = vst.msk [vmem:[#allocation4 + $0x18] sm:$0xff] %vm36, 0.0
    %41 = vst.msk [vmem:[#allocation4 + $0x20] sm:$0xff] %vm36, 0.0
    %42 = vst.msk [vmem:[#allocation4 + $0x28] sm:$0xff] %vm36, 0.0
    %43 = vst.msk [vmem:[#allocation4 + $0x30] sm:$0xff] %vm36, 0.0
    %44 = vst.msk [vmem:[#allocation4 + $0x38] sm:$0xff] %vm36, 0.0
  $region17: #{multi_headed_attention.4} parent=0 // pred_fallthru
    _
  %v45 = vld [vmem:[%s0] sm:$0xf]
  %v46 = vld [vmem:[%s0 + $0x4] sm:$0xf]
  %v47 = vld [vmem:[%s0 + $0x8] sm:$0xf]
  %v48 = vld [vmem:[%s0 + $0xc] sm:$0xf]
  %v49 = vld [vmem:[%s0 + $0x10] sm:$0xf]
  %v50 = vld [vmem:[%s0 + $0x14] sm:$0xf]
  %v51 = vld [vmem:[%s0 + $0x18] sm:$0xf]
  %v52 = vld [vmem:[%s0 + $0x1c] sm:$0xf]
  %v53 = vld [vmem:[%s1] sm:$0xf]
  %v54 = vld [vmem:[%s1 + $0x4] sm:$0xf]
  %v55 = vld [vmem:[%s1 + $0x8] sm:$0xf]
  %v56 = vld [vmem:[%s1 + $0xc] sm:$0xf]
  %v57 = vld [vmem:[%s1 + $0x10] sm:$0xf]
  %v58 = vld [vmem:[%s1 + $0x14] sm:$0xf]
  %v59 = vld [vmem:[%s1 + $0x18] sm:$0xf]
  %v60 = vld [vmem:[%s1 + $0x1c] sm:$0xf]
  %vm61 = vcmask 64512
  %v63 = vsel %vm61, %v45, 0
  %v66 = vsel %vm61, %v53, 0
  %68 = vmatprep.subr.bf16.mxu0 0
  %69 = vmatpush1.bf16.xpose.msra.mxu0 %v66
  %70 = vmatprep.subr.bf16.mxu0 0
  %71 = vmatpush1.bf16.xpose.msra.mxu0 0
  %72 = vmatprep.subr.bf16.mxu0 0
  %73 = vmatpush1.bf16.xpose.msra.mxu0 0
  %74 = vmatprep.subr.bf16.mxu0 0
  %75 = vmatpush1.bf16.xpose.msra.mxu0 0
  %76 = vmatprep.subr.bf16.mxu0 0
  %77 = vmatpush1.bf16.xpose.msra.mxu0 0
  %78 = vmatprep.subr.bf16.mxu0 0
  %79 = vmatpush1.bf16.xpose.msra.mxu0 0
  %80 = vmatprep.subr.bf16.mxu0 0
  %81 = vmatpush1.bf16.xpose.msra.mxu0 0
  %82 = vmatprep.subr.bf16.mxu0 0
  %83 = vmatpush1.bf16.xpose.msra.mxu0 0
  %84 = vmatprep.subr.bf16.mxu0 0
  %85 = vmatpush1.bf16.xpose.msra.mxu0 0
  %86 = vmatprep.subr.bf16.mxu0 0
  %87 = vmatpush1.bf16.xpose.msra.mxu0 0
  %88 = vmatprep.subr.bf16.mxu0 0
  %89 = vmatpush1.bf16.xpose.msra.mxu0 0
  %90 = vmatprep.subr.bf16.mxu0 0
  %91 = vmatpush1.bf16.xpose.msra.mxu0 0
  %92 = vmatprep.subr.bf16.mxu0 0
  %93 = vmatpush1.bf16.xpose.msra.mxu0 0
  %94 = vmatprep.subr.bf16.mxu0 0
  %95 = vmatpush1.bf16.xpose.msra.mxu0 0
  %96 = vmatprep.subr.bf16.mxu0 0
  %97 = vmatpush1.bf16.xpose.msra.mxu0 0
  %98 = vmatprep.subr.bf16.mxu0 0
  %99 = vmatpush1.bf16.xpose.msra.mxu0 0
  %100 = vmatprep.mubr.bf16.mxu0 0
  %101 = vmatmul.mubr.bf16.gmra.mrb[0].mxu0 %v63
  %v102 = vpop.f32.mrb[0].mxu0
  %v103 = vadd.f32 0.0, %v102
  %v104 = vpop.f32.mrb[0].mxu0
  %v105 = vpop.f32.mrb[0].mxu0
  %v106 = vpop.f32.mrb[0].mxu0
  %107 = vdwg.mxu0
  %v109 = vsel %vm61, %v46, 0
  %v112 = vsel %vm61, %v54, 0
  %114 = vmatprep.subr.bf16.mxu0 0
  %115 = vmatpush1.bf16.xpose.msra.mxu0 %v112
  %116 = vmatprep.subr.bf16.mxu0 0
  %117 = vmatpush1.bf16.xpose.msra.mxu0 0
  %118 = vmatprep.subr.bf16.mxu0 0
  %119 = vmatpush1.bf16.xpose.msra.mxu0 0
  %120 = vmatprep.subr.bf16.mxu0 0
  %121 = vmatpush1.bf16.xpose.msra.mxu0 0
  %122 = vmatprep.subr.bf16.mxu0 0
  %123 = vmatpush1.bf16.xpose.msra.mxu0 0
  %124 = vmatprep.subr.bf16.mxu0 0
  %125 = vmatpush1.bf16.xpose.msra.mxu0 0
  %126 = vmatprep.subr.bf16.mxu0 0
  %127 = vmatpush1.bf16.xpose.msra.mxu0 0
  %128 = vmatprep.subr.bf16.mxu0 0
  %129 = vmatpush1.bf16.xpose.msra.mxu0 0
  %130 = vmatprep.subr.bf16.mxu0 0
  %131 = vmatpush1.bf16.xpose.msra.mxu0 0
  %132 = vmatprep.subr.bf16.mxu0 0
  %133 = vmatpush1.bf16.xpose.msra.mxu0 0
  %134 = vmatprep.subr.bf16.mxu0 0
  %135 = vmatpush1.bf16.xpose.msra.mxu0 0
  %136 = vmatprep.subr.bf16.mxu0 0
  %137 = vmatpush1.bf16.xpose.msra.mxu0 0
  %138 = vmatprep.subr.bf16.mxu0 0
  %139 = vmatpush1.bf16.xpose.msra.mxu0 0
  %140 = vmatprep.subr.bf16.mxu0 0
  %141 = vmatpush1.bf16.xpose.msra.mxu0 0
  %142 = vmatprep.subr.bf16.mxu0 0
  %143 = vmatpush1.bf16.xpose.msra.mxu0 0
  %144 = vmatprep.subr.bf16.mxu0 0
  %145 = vmatpush1.bf16.xpose.msra.mxu0 0
  %146 = vmatprep.mubr.bf16.mxu0 0
  %147 = vmatmul.mubr.bf16.gmra.mrb[0].mxu0 %v109
  %v148 = vpop.f32.mrb[0].mxu0
  %v149 = vadd.f32 0.0, %v148
  %v150 = vpop.f32.mrb[0].mxu0
  %v151 = vpop.f32.mrb[0].mxu0
  %v152 = vpop.f32.mrb[0].mxu0
  %153 = vdwg.mxu0
  %v155 = vsel %vm61, %v47, 0
  %v158 = vsel %vm61, %v55, 0
  %160 = vmatprep.subr.bf16.mxu0 0
  %161 = vmatpush1.bf16.xpose.msra.mxu0 %v158
  %162 = vmatprep.subr.bf16.mxu0 0
  %163 = vmatpush1.bf16.xpose.msra.mxu0 0
  %164 = vmatprep.subr.bf16.mxu0 0
  %165 = vmatpush1.bf16.xpose.msra.mxu0 0
  %166 = vmatprep.subr.bf16.mxu0 0
  %167 = vmatpush1.bf16.xpose.msra.mxu0 0
  %168 = vmatprep.subr.bf16.mxu0 0
  %169 = vmatpush1.bf16.xpose.msra.mxu0 0
  %170 = vmatprep.subr.bf16.mxu0 0
  %171 = vmatpush1.bf16.xpose.msra.mxu0 0
  %172 = vmatprep.subr.bf16.mxu0 0
  %173 = vmatpush1.bf16.xpose.msra.mxu0 0
  %174 = vmatprep.subr.bf16.mxu0 0
  %175 = vmatpush1.bf16.xpose.msra.mxu0 0
  %176 = vmatprep.subr.bf16.mxu0 0
  %177 = vmatpush1.bf16.xpose.msra.mxu0 0
  %178 = vmatprep.subr.bf16.mxu0 0
  %179 = vmatpush1.bf16.xpose.msra.mxu0 0
  %180 = vmatprep.subr.bf16.mxu0 0
  %181 = vmatpush1.bf16.xpose.msra.mxu0 0
  %182 = vmatprep.subr.bf16.mxu0 0
  %183 = vmatpush1.bf16.xpose.msra.mxu0 0
  %184 = vmatprep.subr.bf16.mxu0 0
  %185 = vmatpush1.bf16.xpose.msra.mxu0 0
  %186 = vmatprep.subr.bf16.mxu0 0
  %187 = vmatpush1.bf16.xpose.msra.mxu0 0
  %188 = vmatprep.subr.bf16.mxu0 0
  %189 = vmatpush1.bf16.xpose.msra.mxu0 0
  %190 = vmatprep.subr.bf16.mxu0 0
  %191 = vmatpush1.bf16.xpose.msra.mxu0 0
  %192 = vmatprep.mubr.bf16.mxu0 0
  %193 = vmatmul.mubr.bf16.gmra.mrb[0].mxu0 %v155
  %v194 = vpop.f32.mrb[0].mxu0
  %v195 = vadd.f32 0.0, %v194
  %v196 = vpop.f32.mrb[0].mxu0
  %v197 = vpop.f32.mrb[0].mxu0
  %v198 = vpop.f32.mrb[0].mxu0
  %199 = vdwg.mxu0
  %v201 = vsel %vm61, %v48, 0
  %v204 = vsel %vm61, %v56, 0
  %206 = vmatprep.subr.bf16.mxu0 0
  %207 = vmatpush1.bf16.xpose.msra.mxu0 %v204
  %208 = vmatprep.subr.bf16.mxu0 0
  %209 = vmatpush1.bf16.xpose.msra.mxu0 0
  %210 = vmatprep.subr.bf16.mxu0 0
  %211 = vmatpush1.bf16.xpose.msra.mxu0 0
  %212 = vmatprep.subr.bf16.mxu0 0
  %213 = vmatpush1.bf16.xpose.msra.mxu0 0
  %214 = vmatprep.subr.bf16.mxu0 0
  %215 = vmatpush1.bf16.xpose.msra.mxu0 0
  %216 = vmatprep.subr.bf16.mxu0 0
  %217 = vmatpush1.bf16.xpose.msra.mxu0 0
  %218 = vmatprep.subr.bf16.mxu0 0
  %219 = vmatpush1.bf16.xpose.msra.mxu0 0
  %220 = vmatprep.subr.bf16.mxu0 0
  %221 = vmatpush1.bf16.xpose.msra.mxu0 0
  %222 = vmatprep.subr.bf16.mxu0 0
  %223 = vmatpush1.bf16.xpose.msra.mxu0 0
  %224 = vmatprep.subr.bf16.mxu0 0
  %225 = vmatpush1.bf16.xpose.msra.mxu0 0
  %226 = vmatprep.subr.bf16.mxu0 0
  %227 = vmatpush1.bf16.xpose.msra.mxu0 0
  %228 = vmatprep.subr.bf16.mxu0 0
  %229 = vmatpush1.bf16.xpose.msra.mxu0 0
  %230 = vmatprep.subr.bf16.mxu0 0
  %231 = vmatpush1.bf16.xpose.msra.mxu0 0
  %232 = vmatprep.subr.bf16.mxu0 0
  %233 = vmatpush1.bf16.xpose.msra.mxu0 0
  %234 = vmatprep.subr.bf16.mxu0 0
  %235 = vmatpush1.bf16.xpose.msra.mxu0 0
  %236 = vmatprep.subr.bf16.mxu0 0
  %237 = vmatpush1.bf16.xpose.msra.mxu0 0
  %238 = vmatprep.mubr.bf16.mxu0 0
  %239 = vmatmul.mubr.bf16.gmra.mrb[0].mxu0 %v201
  %v240 = vpop.f32.mrb[0].mxu0
  %v241 = vadd.f32 0.0, %v240
  %v242 = vpop.f32.mrb[0].mxu0
  %v243 = vpop.f32.mrb[0].mxu0
  %v244 = vpop.f32.mrb[0].mxu0
  %245 = vdwg.mxu0
  %v247 = vsel %vm61, %v49, 0
  %v250 = vsel %vm61, %v57, 0
  %252 = vmatprep.subr.bf16.mxu0 0
  %253 = vmatpush1.bf16.xpose.msra.mxu0 %v250
  %254 = vmatprep.subr.bf16.mxu0 0
  %255 = vmatpush1.bf16.xpose.msra.mxu0 0
  %256 = vmatprep.subr.bf16.mxu0 0
  %257 = vmatpush1.bf16.xpose.msra.mxu0 0
  %258 = vmatprep.subr.bf16.mxu0 0
  %259 = vmatpush1.bf16.xpose.msra.mxu0 0
  %260 = vmatprep.subr.bf16.mxu0 0
  %261 = vmatpush1.bf16.xpose.msra.mxu0 0
  %262 = vmatprep.subr.bf16.mxu0 0
  %263 = vmatpush1.bf16.xpose.msra.mxu0 0
  %264 = vmatprep.subr.bf16.mxu0 0
  %265 = vmatpush1.bf16.xpose.msra.mxu0 0
  %266 = vmatprep.subr.bf16.mxu0 0
  %267 = vmatpush1.bf16.xpose.msra.mxu0 0
  %268 = vmatprep.subr.bf16.mxu0 0
  %269 = vmatpush1.bf16.xpose.msra.mxu0 0
  %270 = vmatprep.subr.bf16.mxu0 0
  %271 = vmatpush1.bf16.xpose.msra.mxu0 0
  %272 = vmatprep.subr.bf16.mxu0 0
  %273 = vmatpush1.bf16.xpose.msra.mxu0 0
  %274 = vmatprep.subr.bf16.mxu0 0
  %275 = vmatpush1.bf16.xpose.msra.mxu0 0
  %276 = vmatprep.subr.bf16.mxu0 0
  %277 = vmatpush1.bf16.xpose.msra.mxu0 0
  %278 = vmatprep.subr.bf16.mxu0 0
  %279 = vmatpush1.bf16.xpose.msra.mxu0 0
  %280 = vmatprep.subr.bf16.mxu0 0
  %281 = vmatpush1.bf16.xpose.msra.mxu0 0
  %282 = vmatprep.subr.bf16.mxu0 0
  %283 = vmatpush1.bf16.xpose.msra.mxu0 0
  %284 = vmatprep.mubr.bf16.mxu0 0
  %285 = vmatmul.mubr.bf16.gmra.mrb[0].mxu0 %v247
  %v286 = vpop.f32.mrb[0].mxu0
  %v287 = vadd.f32 0.0, %v286
  %v288 = vpop.f32.mrb[0].mxu0
  %v289 = vpop.f32.mrb[0].mxu0
  %v290 = vpop.f32.mrb[0].mxu0
  %291 = vdwg.mxu0
  %v293 = vsel %vm61, %v50, 0
  %v296 = vsel %vm61, %v58, 0
  %298 = vmatprep.subr.bf16.mxu0 0
  %299 = vmatpush1.bf16.xpose.msra.mxu0 %v296
  %300 = vmatprep.subr.bf16.mxu0 0
  %301 = vmatpush1.bf16.xpose.msra.mxu0 0
  %302 = vmatprep.subr.bf16.mxu0 0
  %303 = vmatpush1.bf16.xpose.msra.mxu0 0
  %304 = vmatprep.subr.bf16.mxu0 0
  %305 = vmatpush1.bf16.xpose.msra.mxu0 0
  %306 = vmatprep.subr.bf16.mxu0 0
  %307 = vmatpush1.bf16.xpose.msra.mxu0 0
  %308 = vmatprep.subr.bf16.mxu0 0
  %309 = vmatpush1.bf16.xpose.msra.mxu0 0
  %310 = vmatprep.subr.bf16.mxu0 0
  %311 = vmatpush1.bf16.xpose.msra.mxu0 0
  %312 = vmatprep.subr.bf16.mxu0 0
  %313 = vmatpush1.bf16.xpose.msra.mxu0 0
  %314 = vmatprep.subr.bf16.mxu0 0
  %315 = vmatpush1.bf16.xpose.msra.mxu0 0
  %316 = vmatprep.subr.bf16.mxu0 0
  %317 = vmatpush1.bf16.xpose.msra.mxu0 0
  %318 = vmatprep.subr.bf16.mxu0 0
  %319 = vmatpush1.bf16.xpose.msra.mxu0 0
  %320 = vmatprep.subr.bf16.mxu0 0
  %321 = vmatpush1.bf16.xpose.msra.mxu0 0
  %322 = vmatprep.subr.bf16.mxu0 0
  %323 = vmatpush1.bf16.xpose.msra.mxu0 0
  %324 = vmatprep.subr.bf16.mxu0 0
  %325 = vmatpush1.bf16.xpose.msra.mxu0 0
  %326 = vmatprep.subr.bf16.mxu0 0
  %327 = vmatpush1.bf16.xpose.msra.mxu0 0
  %328 = vmatprep.subr.bf16.mxu0 0
  %329 = vmatpush1.bf16.xpose.msra.mxu0 0
  %330 = vmatprep.mubr.bf16.mxu0 0
  %331 = vmatmul.mubr.bf16.gmra.mrb[0].mxu0 %v293
  %v332 = vpop.f32.mrb[0].mxu0
  %v333 = vadd.f32 0.0, %v332
  %v334 = vpop.f32.mrb[0].mxu0
  %v335 = vpop.f32.mrb[0].mxu0
  %v336 = vpop.f32.mrb[0].mxu0
  %337 = vdwg.mxu0
  %v339 = vsel %vm61, %v51, 0
  %v342 = vsel %vm61, %v59, 0
  %344 = vmatprep.subr.bf16.mxu0 0
  %345 = vmatpush1.bf16.xpose.msra.mxu0 %v342
  %346 = vmatprep.subr.bf16.mxu0 0
  %347 = vmatpush1.bf16.xpose.msra.mxu0 0
  %348 = vmatprep.subr.bf16.mxu0 0
  %349 = vmatpush1.bf16.xpose.msra.mxu0 0
  %350 = vmatprep.subr.bf16.mxu0 0
  %351 = vmatpush1.bf16.xpose.msra.mxu0 0
  %352 = vmatprep.subr.bf16.mxu0 0
  %353 = vmatpush1.bf16.xpose.msra.mxu0 0
  %354 = vmatprep.subr.bf16.mxu0 0
  %355 = vmatpush1.bf16.xpose.msra.mxu0 0
  %356 = vmatprep.subr.bf16.mxu0 0
  %357 = vmatpush1.bf16.xpose.msra.mxu0 0
  %358 = vmatprep.subr.bf16.mxu0 0
  %359 = vmatpush1.bf16.xpose.msra.mxu0 0
  %360 = vmatprep.subr.bf16.mxu0 0
  %361 = vmatpush1.bf16.xpose.msra.mxu0 0
  %362 = vmatprep.subr.bf16.mxu0 0
  %363 = vmatpush1.bf16.xpose.msra.mxu0 0
  %364 = vmatprep.subr.bf16.mxu0 0
  %365 = vmatpush1.bf16.xpose.msra.mxu0 0
  %366 = vmatprep.subr.bf16.mxu0 0
  %367 = vmatpush1.bf16.xpose.msra.mxu0 0
  %368 = vmatprep.subr.bf16.mxu0 0
  %369 = vmatpush1.bf16.xpose.msra.mxu0 0
  %370 = vmatprep.subr.bf16.mxu0 0
  %371 = vmatpush1.bf16.xpose.msra.mxu0 0
  %372 = vmatprep.subr.bf16.mxu0 0
  %373 = vmatpush1.bf16.xpose.msra.mxu0 0
  %374 = vmatprep.subr.bf16.mxu0 0
  %375 = vmatpush1.bf16.xpose.msra.mxu0 0
  %376 = vmatprep.mubr.bf16.mxu0 0
  %377 = vmatmul.mubr.bf16.gmra.mrb[0].mxu0 %v339
  %v378 = vpop.f32.mrb[0].mxu0
  %v379 = vadd.f32 0.0, %v378
  %v380 = vpop.f32.mrb[0].mxu0
  %v381 = vpop.f32.mrb[0].mxu0
  %v382 = vpop.f32.mrb[0].mxu0
  %383 = vdwg.mxu0
  %v385 = vsel %vm61, %v52, 0
  %v388 = vsel %vm61, %v60, 0
  %390 = vmatprep.subr.bf16.mxu0 0
  %391 = vmatpush1.bf16.xpose.msra.mxu0 %v388
  %392 = vmatprep.subr.bf16.mxu0 0
  %393 = vmatpush1.bf16.xpose.msra.mxu0 0
  %394 = vmatprep.subr.bf16.mxu0 0
  %395 = vmatpush1.bf16.xpose.msra.mxu0 0
  %396 = vmatprep.subr.bf16.mxu0 0
  %397 = vmatpush1.bf16.xpose.msra.mxu0 0
  %398 = vmatprep.subr.bf16.mxu0 0
  %399 = vmatpush1.bf16.xpose.msra.mxu0 0
  %400 = vmatprep.subr.bf16.mxu0 0
  %401 = vmatpush1.bf16.xpose.msra.mxu0 0
  %402 = vmatprep.subr.bf16.mxu0 0
  %403 = vmatpush1.bf16.xpose.msra.mxu0 0
  %404 = vmatprep.subr.bf16.mxu0 0
  %405 = vmatpush1.bf16.xpose.msra.mxu0 0
  %406 = vmatprep.subr.bf16.mxu0 0
  %407 = vmatpush1.bf16.xpose.msra.mxu0 0
  %408 = vmatprep.subr.bf16.mxu0 0
  %409 = vmatpush1.bf16.xpose.msra.mxu0 0
  %410 = vmatprep.subr.bf16.mxu0 0
  %411 = vmatpush1.bf16.xpose.msra.mxu0 0
  %412 = vmatprep.subr.bf16.mxu0 0
  %413 = vmatpush1.bf16.xpose.msra.mxu0 0
  %414 = vmatprep.subr.bf16.mxu0 0
  %415 = vmatpush1.bf16.xpose.msra.mxu0 0
  %416 = vmatprep.subr.bf16.mxu0 0
  %417 = vmatpush1.bf16.xpose.msra.mxu0 0
  %418 = vmatprep.subr.bf16.mxu0 0
  %419 = vmatpush1.bf16.xpose.msra.mxu0 0
  %420 = vmatprep.subr.bf16.mxu0 0
  %421 = vmatpush1.bf16.xpose.msra.mxu0 0
  %422 = vmatprep.mubr.bf16.mxu0 0
  %423 = vmatmul.mubr.bf16.gmra.mrb[0].mxu0 %v385
  %v424 = vpop.f32.mrb[0].mxu0
  %v425 = vadd.f32 0.0, %v424
  %v426 = vpop.f32.mrb[0].mxu0
  %v427 = vpop.f32.mrb[0].mxu0
  %v428 = vpop.f32.mrb[0].mxu0
  %429 = vdwg.mxu0
  %v430 = vld [vmem:[#allocation2] sm:$0xff]
  %v431 = vld [vmem:[#allocation2 + $0x8] sm:$0xff]
  %v432 = vld [vmem:[#allocation2 + $0x10] sm:$0xff]
  %v433 = vld [vmem:[#allocation2 + $0x18] sm:$0xff]
  %v434 = vld [vmem:[#allocation2 + $0x20] sm:$0xff]
  %v435 = vld [vmem:[#allocation2 + $0x28] sm:$0xff]
  %v436 = vld [vmem:[#allocation2 + $0x30] sm:$0xff]
  %v437 = vld [vmem:[#allocation2 + $0x38] sm:$0xff]
  %v438 = vsel %vm61, %v103, -inf
  %439 = vmax.xlane.f32.xlu0 %v438
  %v440 = vpop.xlane.xlu0 %439
  %v441 = vsel %vm61, %v149, -inf
  %442 = vmax.xlane.f32.xlu0 %v441
  %v443 = vpop.xlane.xlu0 %442
  %v444 = vsel %vm61, %v195, -inf
  %445 = vmax.xlane.f32.xlu0 %v444
  %v446 = vpop.xlane.xlu0 %445
  %v447 = vsel %vm61, %v241, -inf
  %448 = vmax.xlane.f32.xlu0 %v447
  %v449 = vpop.xlane.xlu0 %448
  %v450 = vsel %vm61, %v287, -inf
  %451 = vmax.xlane.f32.xlu0 %v450
  %v452 = vpop.xlane.xlu0 %451
  %v453 = vsel %vm61, %v333, -inf
  %454 = vmax.xlane.f32.xlu0 %v453
  %v455 = vpop.xlane.xlu0 %454
  %v456 = vsel %vm61, %v379, -inf
  %457 = vmax.xlane.f32.xlu0 %v456
  %v458 = vpop.xlane.xlu0 %457
  %v459 = vsel %vm61, %v425, -inf
  %460 = vmax.xlane.f32.xlu0 %v459
  %v461 = vpop.xlane.xlu0 %460
  %v462 = vmax.f32 %v430, %v440
  %v463 = vmax.f32 %v431, %v443
  %v464 = vmax.f32 %v432, %v446
  %v465 = vmax.f32 %v433, %v449
  %v466 = vmax.f32 %v434, %v452
  %v467 = vmax.f32 %v435, %v455
  %v468 = vmax.f32 %v436, %v458
  %v469 = vmax.f32 %v437, %v461
  %v470 = vsub.f32 %v430, %v462
  %v471 = vsub.f32 %v431, %v463
  %v472 = vsub.f32 %v432, %v464
  %v473 = vsub.f32 %v433, %v465
  %v474 = vsub.f32 %v434, %v466
  %v475 = vsub.f32 %v435, %v467
  %v476 = vsub.f32 %v436, %v468
  %v477 = vsub.f32 %v437, %v469
  %v478 = vmul.f32 %v470, 1.442695
  %v479 = vpow.pop %v478
  %v480 = vmul.f32 %v471, 1.442695
  %v481 = vpow.pop %v480
  %v482 = vmul.f32 %v472, 1.442695
  %v483 = vpow.pop %v482
  %v484 = vmul.f32 %v473, 1.442695
  %v485 = vpow.pop %v484
  %v486 = vmul.f32 %v474, 1.442695
  %v487 = vpow.pop %v486
  %v488 = vmul.f32 %v475, 1.442695
  %v489 = vpow.pop %v488
  %v490 = vmul.f32 %v476, 1.442695
  %v491 = vpow.pop %v490
  %v492 = vmul.f32 %v477, 1.442695
  %v493 = vpow.pop %v492
  %495 = vset.pattern.permute.xlu0 0
  %496 = vperm.xlu0 %495, %v462
  %v497 = vpop.permute.xlu0 %496
  %500 = vset.pattern.permute.xlu0 0
  %501 = vperm.xlu0 %500, %v463
  %v502 = vpop.permute.xlu0 %501
  %505 = vset.pattern.permute.xlu0 0
  %506 = vperm.xlu0 %505, %v464
  %v507 = vpop.permute.xlu0 %506
  %510 = vset.pattern.permute.xlu0 0
  %511 = vperm.xlu0 %510, %v465
  %v512 = vpop.permute.xlu0 %511
  %515 = vset.pattern.permute.xlu0 0
  %516 = vperm.xlu0 %515, %v466
  %v517 = vpop.permute.xlu0 %516
  %520 = vset.pattern.permute.xlu0 0
  %521 = vperm.xlu0 %520, %v467
  %v522 = vpop.permute.xlu0 %521
  %525 = vset.pattern.permute.xlu0 0
  %526 = vperm.xlu0 %525, %v468
  %v527 = vpop.permute.xlu0 %526
  %530 = vset.pattern.permute.xlu0 0
  %531 = vperm.xlu0 %530, %v469
  %v532 = vpop.permute.xlu0 %531
  %v534 = vsub.f32 %v103, %v497
  %v535 = vsub.f32 %v149, %v502
  %v536 = vsub.f32 %v195, %v507
  %v537 = vsub.f32 %v241, %v512
  %v538 = vsub.f32 %v287, %v517
  %v539 = vsub.f32 %v333, %v522
  %v540 = vsub.f32 %v379, %v527
  %v541 = vsub.f32 %v425, %v532
  %v542 = vmul.f32 %v534, 1.442695
  %v543 = vpow.pop %v542
  %v544 = vmul.f32 %v535, 1.442695
  %v545 = vpow.pop %v544
  %v546 = vmul.f32 %v536, 1.442695
  %v547 = vpow.pop %v546
  %v548 = vmul.f32 %v537, 1.442695
  %v549 = vpow.pop %v548
  %v550 = vmul.f32 %v538, 1.442695
  %v551 = vpow.pop %v550
  %v552 = vmul.f32 %v539, 1.442695
  %v553 = vpow.pop %v552
  %v554 = vmul.f32 %v540, 1.442695
  %v555 = vpow.pop %v554
  %v556 = vmul.f32 %v541, 1.442695
  %v557 = vpow.pop %v556
  %v558 = vld [vmem:[#allocation3] sm:$0xff]
  %v559 = vld [vmem:[#allocation3 + $0x8] sm:$0xff]
  %v560 = vld [vmem:[#allocation3 + $0x10] sm:$0xff]
  %v561 = vld [vmem:[#allocation3 + $0x18] sm:$0xff]
  %v562 = vld [vmem:[#allocation3 + $0x20] sm:$0xff]
  %v563 = vld [vmem:[#allocation3 + $0x28] sm:$0xff]
  %v564 = vld [vmem:[#allocation3 + $0x30] sm:$0xff]
  %v565 = vld [vmem:[#allocation3 + $0x38] sm:$0xff]
  %v566 = vmul.f32 %v479, %v558
  %v567 = vmul.f32 %v481, %v559
  %v568 = vmul.f32 %v483, %v560
  %v569 = vmul.f32 %v485, %v561
  %v570 = vmul.f32 %v487, %v562
  %v571 = vmul.f32 %v489, %v563
  %v572 = vmul.f32 %v491, %v564
  %v573 = vmul.f32 %v493, %v565
  %v574 = vsel %vm61, %v543, 0.0
  %575 = vadd.xlane.f32.xlu0 %v574
  %v576 = vpop.xlane.xlu0 %575
  %v577 = vsel %vm61, %v545, 0.0
  %578 = vadd.xlane.f32.xlu0 %v577
  %v579 = vpop.xlane.xlu0 %578
  %v580 = vsel %vm61, %v547, 0.0
  %581 = vadd.xlane.f32.xlu0 %v580
  %v582 = vpop.xlane.xlu0 %581
  %v583 = vsel %vm61, %v549, 0.0
  %584 = vadd.xlane.f32.xlu0 %v583
  %v585 = vpop.xlane.xlu0 %584
  %v586 = vsel %vm61, %v551, 0.0
  %587 = vadd.xlane.f32.xlu0 %v586
  %v588 = vpop.xlane.xlu0 %587
  %v589 = vsel %vm61, %v553, 0.0
  %590 = vadd.xlane.f32.xlu0 %v589
  %v591 = vpop.xlane.xlu0 %590
  %v592 = vsel %vm61, %v555, 0.0
  %593 = vadd.xlane.f32.xlu0 %v592
  %v594 = vpop.xlane.xlu0 %593
  %v595 = vsel %vm61, %v557, 0.0
  %596 = vadd.xlane.f32.xlu0 %v595
  %v597 = vpop.xlane.xlu0 %596
  %v598 = vadd.f32 %v566, %v576
  %v599 = vadd.f32 %v567, %v579
  %v600 = vadd.f32 %v568, %v582
  %v601 = vadd.f32 %v569, %v585
  %v602 = vadd.f32 %v570, %v588
  %v603 = vadd.f32 %v571, %v591
  %v604 = vadd.f32 %v572, %v594
  %v605 = vadd.f32 %v573, %v597
  %vm606 = vcmask 7168
  %607 = vst.msk [vmem:[#allocation3] sm:$0xff] %vm606, %v598
  %608 = vst.msk [vmem:[#allocation3 + $0x8] sm:$0xff] %vm606, %v599
  %609 = vst.msk [vmem:[#allocation3 + $0x10] sm:$0xff] %vm606, %v600
  %610 = vst.msk [vmem:[#allocation3 + $0x18] sm:$0xff] %vm606, %v601
  %611 = vst.msk [vmem:[#allocation3 + $0x20] sm:$0xff] %vm606, %v602
  %612 = vst.msk [vmem:[#allocation3 + $0x28] sm:$0xff] %vm606, %v603
  %613 = vst.msk [vmem:[#allocation3 + $0x30] sm:$0xff] %vm606, %v604
  %614 = vst.msk [vmem:[#allocation3 + $0x38] sm:$0xff] %vm606, %v605
  %v615 = vld [vmem:[#allocation4] sm:$0xff]
  %v616 = vld [vmem:[#allocation4 + $0x8] sm:$0xff]
  %v617 = vld [vmem:[#allocation4 + $0x10] sm:$0xff]
  %v618 = vld [vmem:[#allocation4 + $0x18] sm:$0xff]
  %v619 = vld [vmem:[#allocation4 + $0x20] sm:$0xff]
  %v620 = vld [vmem:[#allocation4 + $0x28] sm:$0xff]
  %v621 = vld [vmem:[#allocation4 + $0x30] sm:$0xff]
  %v622 = vld [vmem:[#allocation4 + $0x38] sm:$0xff]
  %624 = vset.pattern.permute.xlu0 0
  %625 = vperm.xlu0 %624, %v479
  %v626 = vpop.permute.xlu0 %625
  %629 = vset.pattern.permute.xlu0 0
  %630 = vperm.xlu0 %629, %v481
  %v631 = vpop.permute.xlu0 %630
  %634 = vset.pattern.permute.xlu0 0
  %635 = vperm.xlu0 %634, %v483
  %v636 = vpop.permute.xlu0 %635
  %639 = vset.pattern.permute.xlu0 0
  %640 = vperm.xlu0 %639, %v485
  %v641 = vpop.permute.xlu0 %640
  %644 = vset.pattern.permute.xlu0 0
  %645 = vperm.xlu0 %644, %v487
  %v646 = vpop.permute.xlu0 %645
  %649 = vset.pattern.permute.xlu0 0
  %650 = vperm.xlu0 %649, %v489
  %v651 = vpop.permute.xlu0 %650
  %654 = vset.pattern.permute.xlu0 0
  %655 = vperm.xlu0 %654, %v491
  %v656 = vpop.permute.xlu0 %655
  %659 = vset.pattern.permute.xlu0 0
  %660 = vperm.xlu0 %659, %v493
  %v661 = vpop.permute.xlu0 %660
  %v663 = vmul.f32 %v626, %v615
  %v664 = vmul.f32 %v631, %v616
  %v665 = vmul.f32 %v636, %v617
  %v666 = vmul.f32 %v641, %v618
  %v667 = vmul.f32 %v646, %v619
  %v668 = vmul.f32 %v651, %v620
  %v669 = vmul.f32 %v656, %v621
  %v670 = vmul.f32 %v661, %v622
  %v671 = vpack.c.bf16 %v543, %v543
  %v672 = vpack.c.bf16 %v545, %v545
  %v673 = vpack.c.bf16 %v547, %v547
  %v674 = vpack.c.bf16 %v549, %v549
  %v675 = vpack.c.bf16 %v551, %v551
  %v676 = vpack.c.bf16 %v553, %v553
  %v677 = vpack.c.bf16 %v555, %v555
  %v678 = vpack.c.bf16 %v557, %v557
  %v679 = vld [vmem:[%s2] sm:$0xf]
  %v680 = vld [vmem:[%s2 + $0x4] sm:$0xf]
  %v681 = vld [vmem:[%s2 + $0x8] sm:$0xf]
  %v682 = vld [vmem:[%s2 + $0xc] sm:$0xf]
  %v683 = vld [vmem:[%s2 + $0x10] sm:$0xf]
  %v684 = vld [vmem:[%s2 + $0x14] sm:$0xf]
  %v685 = vld [vmem:[%s2 + $0x18] sm:$0xf]
  %v686 = vld [vmem:[%s2 + $0x1c] sm:$0xf]
  %v688 = vsel %vm61, %v671, 0
  %vm690 = vcmask 1043456
  %v692 = vsel %vm690, %v679, 0
  %694 = vmatprep.subr.bf16.mxu0 0
  %695 = vmatpush1.bf16.msra.mxu0 %v692
  %696 = vmatprep.subr.bf16.mxu0 0
  %697 = vmatpush1.bf16.msra.mxu0 0
  %698 = vmatprep.subr.bf16.mxu0 0
  %699 = vmatpush1.bf16.msra.mxu0 0
  %700 = vmatprep.subr.bf16.mxu0 0
  %701 = vmatpush1.bf16.msra.mxu0 0
  %702 = vmatprep.subr.bf16.mxu0 0
  %703 = vmatpush1.bf16.msra.mxu0 0
  %704 = vmatprep.subr.bf16.mxu0 0
  %705 = vmatpush1.bf16.msra.mxu0 0
  %706 = vmatprep.subr.bf16.mxu0 0
  %707 = vmatpush1.bf16.msra.mxu0 0
  %708 = vmatprep.subr.bf16.mxu0 0
  %709 = vmatpush1.bf16.msra.mxu0 0
  %710 = vmatprep.subr.bf16.mxu0 0
  %711 = vmatpush1.bf16.msra.mxu0 0
  %712 = vmatprep.subr.bf16.mxu0 0
  %713 = vmatpush1.bf16.msra.mxu0 0
  %714 = vmatprep.subr.bf16.mxu0 0
  %715 = vmatpush1.bf16.msra.mxu0 0
  %716 = vmatprep.subr.bf16.mxu0 0
  %717 = vmatpush1.bf16.msra.mxu0 0
  %718 = vmatprep.subr.bf16.mxu0 0
  %719 = vmatpush1.bf16.msra.mxu0 0
  %720 = vmatprep.subr.bf16.mxu0 0
  %721 = vmatpush1.bf16.msra.mxu0 0
  %722 = vmatprep.subr.bf16.mxu0 0
  %723 = vmatpush1.bf16.msra.mxu0 0
  %724 = vmatprep.subr.bf16.mxu0 0
  %725 = vmatpush1.bf16.msra.mxu0 0
  %726 = vmatprep.mubr.bf16.mxu0 0
  %727 = vmatmul.mubr.bf16.gmra.mrb[0].mxu0 %v688
  %v728 = vpop.f32.mrb[0].mxu0
  %v729 = vadd.f32 0.0, %v728
  %v730 = vpop.f32.mrb[0].mxu0
  %v731 = vpop.f32.mrb[0].mxu0
  %v732 = vpop.f32.mrb[0].mxu0
  %733 = vdwg.mxu0
  %v735 = vsel %vm61, %v672, 0
  %v738 = vsel %vm690, %v680, 0
  %740 = vmatprep.subr.bf16.mxu0 0
  %741 = vmatpush1.bf16.msra.mxu0 %v738
  %742 = vmatprep.subr.bf16.mxu0 0
  %743 = vmatpush1.bf16.msra.mxu0 0
  %744 = vmatprep.subr.bf16.mxu0 0
  %745 = vmatpush1.bf16.msra.mxu0 0
  %746 = vmatprep.subr.bf16.mxu0 0
  %747 = vmatpush1.bf16.msra.mxu0 0
  %748 = vmatprep.subr.bf16.mxu0 0
  %749 = vmatpush1.bf16.msra.mxu0 0
  %750 = vmatprep.subr.bf16.mxu0 0
  %751 = vmatpush1.bf16.msra.mxu0 0
  %752 = vmatprep.subr.bf16.mxu0 0
  %753 = vmatpush1.bf16.msra.mxu0 0
  %754 = vmatprep.subr.bf16.mxu0 0
  %755 = vmatpush1.bf16.msra.mxu0 0
  %756 = vmatprep.subr.bf16.mxu0 0
  %757 = vmatpush1.bf16.msra.mxu0 0
  %758 = vmatprep.subr.bf16.mxu0 0
  %759 = vmatpush1.bf16.msra.mxu0 0
  %760 = vmatprep.subr.bf16.mxu0 0
  %761 = vmatpush1.bf16.msra.mxu0 0
  %762 = vmatprep.subr.bf16.mxu0 0
  %763 = vmatpush1.bf16.msra.mxu0 0
  %764 = vmatprep.subr.bf16.mxu0 0
  %765 = vmatpush1.bf16.msra.mxu0 0
  %766 = vmatprep.subr.bf16.mxu0 0
  %767 = vmatpush1.bf16.msra.mxu0 0
  %768 = vmatprep.subr.bf16.mxu0 0
  %769 = vmatpush1.bf16.msra.mxu0 0
  %770 = vmatprep.subr.bf16.mxu0 0
  %771 = vmatpush1.bf16.msra.mxu0 0
  %772 = vmatprep.mubr.bf16.mxu0 0
  %773 = vmatmul.mubr.bf16.gmra.mrb[0].mxu0 %v735
  %v774 = vpop.f32.mrb[0].mxu0
  %v775 = vadd.f32 0.0, %v774
  %v776 = vpop.f32.mrb[0].mxu0
  %v777 = vpop.f32.mrb[0].mxu0
  %v778 = vpop.f32.mrb[0].mxu0
  %779 = vdwg.mxu0
  %v781 = vsel %vm61, %v673, 0
  %v784 = vsel %vm690, %v681, 0
  %786 = vmatprep.subr.bf16.mxu0 0
  %787 = vmatpush1.bf16.msra.mxu0 %v784
  %788 = vmatprep.subr.bf16.mxu0 0
  %789 = vmatpush1.bf16.msra.mxu0 0
  %790 = vmatprep.subr.bf16.mxu0 0
  %791 = vmatpush1.bf16.msra.mxu0 0
  %792 = vmatprep.subr.bf16.mxu0 0
  %793 = vmatpush1.bf16.msra.mxu0 0
  %794 = vmatprep.subr.bf16.mxu0 0
  %795 = vmatpush1.bf16.msra.mxu0 0
  %796 = vmatprep.subr.bf16.mxu0 0
  %797 = vmatpush1.bf16.msra.mxu0 0
  %798 = vmatprep.subr.bf16.mxu0 0
  %799 = vmatpush1.bf16.msra.mxu0 0
  %800 = vmatprep.subr.bf16.mxu0 0
  %801 = vmatpush1.bf16.msra.mxu0 0
  %802 = vmatprep.subr.bf16.mxu0 0
  %803 = vmatpush1.bf16.msra.mxu0 0
  %804 = vmatprep.subr.bf16.mxu0 0
  %805 = vmatpush1.bf16.msra.mxu0 0
  %806 = vmatprep.subr.bf16.mxu0 0
  %807 = vmatpush1.bf16.msra.mxu0 0
  %808 = vmatprep.subr.bf16.mxu0 0
  %809 = vmatpush1.bf16.msra.mxu0 0
  %810 = vmatprep.subr.bf16.mxu0 0
  %811 = vmatpush1.bf16.msra.mxu0 0
  %812 = vmatprep.subr.bf16.mxu0 0
  %813 = vmatpush1.bf16.msra.mxu0 0
  %814 = vmatprep.subr.bf16.mxu0 0
  %815 = vmatpush1.bf16.msra.mxu0 0
  %816 = vmatprep.subr.bf16.mxu0 0
  %817 = vmatpush1.bf16.msra.mxu0 0
  %818 = vmatprep.mubr.bf16.mxu0 0
  %819 = vmatmul.mubr.bf16.gmra.mrb[0].mxu0 %v781
  %v820 = vpop.f32.mrb[0].mxu0
  %v821 = vadd.f32 0.0, %v820
  %v822 = vpop.f32.mrb[0].mxu0
  %v823 = vpop.f32.mrb[0].mxu0
  %v824 = vpop.f32.mrb[0].mxu0
  %825 = vdwg.mxu0
  %v827 = vsel %vm61, %v674, 0
  %v830 = vsel %vm690, %v682, 0
  %832 = vmatprep.subr.bf16.mxu0 0
  %833 = vmatpush1.bf16.msra.mxu0 %v830
  %834 = vmatprep.subr.bf16.mxu0 0
  %835 = vmatpush1.bf16.msra.mxu0 0
  %836 = vmatprep.subr.bf16.mxu0 0
  %837 = vmatpush1.bf16.msra.mxu0 0
  %838 = vmatprep.subr.bf16.mxu0 0
  %839 = vmatpush1.bf16.msra.mxu0 0
  %840 = vmatprep.subr.bf16.mxu0 0
  %841 = vmatpush1.bf16.msra.mxu0 0
  %842 = vmatprep.subr.bf16.mxu0 0
  %843 = vmatpush1.bf16.msra.mxu0 0
  %844 = vmatprep.subr.bf16.mxu0 0
  %845 = vmatpush1.bf16.msra.mxu0 0
  %846 = vmatprep.subr.bf16.mxu0 0
  %847 = vmatpush1.bf16.msra.mxu0 0
  %848 = vmatprep.subr.bf16.mxu0 0
  %849 = vmatpush1.bf16.msra.mxu0 0
  %850 = vmatprep.subr.bf16.mxu0 0
  %851 = vmatpush1.bf16.msra.mxu0 0
  %852 = vmatprep.subr.bf16.mxu0 0
  %853 = vmatpush1.bf16.msra.mxu0 0
  %854 = vmatprep.subr.bf16.mxu0 0
  %855 = vmatpush1.bf16.msra.mxu0 0
  %856 = vmatprep.subr.bf16.mxu0 0
  %857 = vmatpush1.bf16.msra.mxu0 0
  %858 = vmatprep.subr.bf16.mxu0 0
  %859 = vmatpush1.bf16.msra.mxu0 0
  %860 = vmatprep.subr.bf16.mxu0 0
  %861 = vmatpush1.bf16.msra.mxu0 0
  %862 = vmatprep.subr.bf16.mxu0 0
  %863 = vmatpush1.bf16.msra.mxu0 0
  %864 = vmatprep.mubr.bf16.mxu0 0
  %865 = vmatmul.mubr.bf16.gmra.mrb[0].mxu0 %v827
  %v866 = vpop.f32.mrb[0].mxu0
  %v867 = vadd.f32 0.0, %v866
  %v868 = vpop.f32.mrb[0].mxu0
  %v869 = vpop.f32.mrb[0].mxu0
  %v870 = vpop.f32.mrb[0].mxu0
  %871 = vdwg.mxu0
  %v873 = vsel %vm61, %v675, 0
  %v876 = vsel %vm690, %v683, 0
  %878 = vmatprep.subr.bf16.mxu0 0
  %879 = vmatpush1.bf16.msra.mxu0 %v876
  %880 = vmatprep.subr.bf16.mxu0 0
  %881 = vmatpush1.bf16.msra.mxu0 0
  %882 = vmatprep.subr.bf16.mxu0 0
  %883 = vmatpush1.bf16.msra.mxu0 0
  %884 = vmatprep.subr.bf16.mxu0 0
  %885 = vmatpush1.bf16.msra.mxu0 0
  %886 = vmatprep.subr.bf16.mxu0 0
  %887 = vmatpush1.bf16.msra.mxu0 0
  %888 = vmatprep.subr.bf16.mxu0 0
  %889 = vmatpush1.bf16.msra.mxu0 0
  %890 = vmatprep.subr.bf16.mxu0 0
  %891 = vmatpush1.bf16.msra.mxu0 0
  %892 = vmatprep.subr.bf16.mxu0 0
  %893 = vmatpush1.bf16.msra.mxu0 0
  %894 = vmatprep.subr.bf16.mxu0 0
  %895 = vmatpush1.bf16.msra.mxu0 0
  %896 = vmatprep.subr.bf16.mxu0 0
  %897 = vmatpush1.bf16.msra.mxu0 0
  %898 = vmatprep.subr.bf16.mxu0 0
  %899 = vmatpush1.bf16.msra.mxu0 0
  %900 = vmatprep.subr.bf16.mxu0 0
  %901 = vmatpush1.bf16.msra.mxu0 0
  %902 = vmatprep.subr.bf16.mxu0 0
  %903 = vmatpush1.bf16.msra.mxu0 0
  %904 = vmatprep.subr.bf16.mxu0 0
  %905 = vmatpush1.bf16.msra.mxu0 0
  %906 = vmatprep.subr.bf16.mxu0 0
  %907 = vmatpush1.bf16.msra.mxu0 0
  %908 = vmatprep.subr.bf16.mxu0 0
  %909 = vmatpush1.bf16.msra.mxu0 0
  %910 = vmatprep.mubr.bf16.mxu0 0
  %911 = vmatmul.mubr.bf16.gmra.mrb[0].mxu0 %v873
  %v912 = vpop.f32.mrb[0].mxu0
  %v913 = vadd.f32 0.0, %v912
  %v914 = vpop.f32.mrb[0].mxu0
  %v915 = vpop.f32.mrb[0].mxu0
  %v916 = vpop.f32.mrb[0].mxu0
  %917 = vdwg.mxu0
  %v919 = vsel %vm61, %v676, 0
  %v922 = vsel %vm690, %v684, 0
  %924 = vmatprep.subr.bf16.mxu0 0
  %925 = vmatpush1.bf16.msra.mxu0 %v922
  %926 = vmatprep.subr.bf16.mxu0 0
  %927 = vmatpush1.bf16.msra.mxu0 0
  %928 = vmatprep.subr.bf16.mxu0 0
  %929 = vmatpush1.bf16.msra.mxu0 0
  %930 = vmatprep.subr.bf16.mxu0 0
  %931 = vmatpush1.bf16.msra.mxu0 0
  %932 = vmatprep.subr.bf16.mxu0 0
  %933 = vmatpush1.bf16.msra.mxu0 0
  %934 = vmatprep.subr.bf16.mxu0 0
  %935 = vmatpush1.bf16.msra.mxu0 0
  %936 = vmatprep.subr.bf16.mxu0 0
  %937 = vmatpush1.bf16.msra.mxu0 0
  %938 = vmatprep.subr.bf16.mxu0 0
  %939 = vmatpush1.bf16.msra.mxu0 0
  %940 = vmatprep.subr.bf16.mxu0 0
  %941 = vmatpush1.bf16.msra.mxu0 0
  %942 = vmatprep.subr.bf16.mxu0 0
  %943 = vmatpush1.bf16.msra.mxu0 0
  %944 = vmatprep.subr.bf16.mxu0 0
  %945 = vmatpush1.bf16.msra.mxu0 0
  %946 = vmatprep.subr.bf16.mxu0 0
  %947 = vmatpush1.bf16.msra.mxu0 0
  %948 = vmatprep.subr.bf16.mxu0 0
  %949 = vmatpush1.bf16.msra.mxu0 0
  %950 = vmatprep.subr.bf16.mxu0 0
  %951 = vmatpush1.bf16.msra.mxu0 0
  %952 = vmatprep.subr.bf16.mxu0 0
  %953 = vmatpush1.bf16.msra.mxu0 0
  %954 = vmatprep.subr.bf16.mxu0 0
  %955 = vmatpush1.bf16.msra.mxu0 0
  %956 = vmatprep.mubr.bf16.mxu0 0
  %957 = vmatmul.mubr.bf16.gmra.mrb[0].mxu0 %v919
  %v958 = vpop.f32.mrb[0].mxu0
  %v959 = vadd.f32 0.0, %v958
  %v960 = vpop.f32.mrb[0].mxu0
  %v961 = vpop.f32.mrb[0].mxu0
  %v962 = vpop.f32.mrb[0].mxu0
  %963 = vdwg.mxu0
  %v965 = vsel %vm61, %v677, 0
  %v968 = vsel %vm690, %v685, 0
  %970 = vmatprep.subr.bf16.mxu0 0
  %971 = vmatpush1.bf16.msra.mxu0 %v968
  %972 = vmatprep.subr.bf16.mxu0 0
  %973 = vmatpush1.bf16.msra.mxu0 0
  %974 = vmatprep.subr.bf16.mxu0 0
  %975 = vmatpush1.bf16.msra.mxu0 0
  %976 = vmatprep.subr.bf16.mxu0 0
  %977 = vmatpush1.bf16.msra.mxu0 0
  %978 = vmatprep.subr.bf16.mxu0 0
  %979 = vmatpush1.bf16.msra.mxu0 0
  %980 = vmatprep.subr.bf16.mxu0 0
  %981 = vmatpush1.bf16.msra.mxu0 0
  %982 = vmatprep.subr.bf16.mxu0 0
  %983 = vmatpush1.bf16.msra.mxu0 0
  %984 = vmatprep.subr.bf16.mxu0 0
  %985 = vmatpush1.bf16.msra.mxu0 0
  %986 = vmatprep.subr.bf16.mxu0 0
  %987 = vmatpush1.bf16.msra.mxu0 0
  %988 = vmatprep.subr.bf16.mxu0 0
  %989 = vmatpush1.bf16.msra.mxu0 0
  %990 = vmatprep.subr.bf16.mxu0 0
  %991 = vmatpush1.bf16.msra.mxu0 0
  %992 = vmatprep.subr.bf16.mxu0 0
  %993 = vmatpush1.bf16.msra.mxu0 0
  %994 = vmatprep.subr.bf16.mxu0 0
  %995 = vmatpush1.bf16.msra.mxu0 0
  %996 = vmatprep.subr.bf16.mxu0 0
  %997 = vmatpush1.bf16.msra.mxu0 0
  %998 = vmatprep.subr.bf16.mxu0 0
  %999 = vmatpush1.bf16.msra.mxu0 0
  %1000 = vmatprep.subr.bf16.mxu0 0
  %1001 = vmatpush1.bf16.msra.mxu0 0
  %1002 = vmatprep.mubr.bf16.mxu0 0
  %1003 = vmatmul.mubr.bf16.gmra.mrb[0].mxu0 %v965
  %v1004 = vpop.f32.mrb[0].mxu0
  %v1005 = vadd.f32 0.0, %v1004
  %v1006 = vpop.f32.mrb[0].mxu0
  %v1007 = vpop.f32.mrb[0].mxu0
  %v1008 = vpop.f32.mrb[0].mxu0
  %1009 = vdwg.mxu0
  %v1011 = vsel %vm61, %v678, 0
  %v1014 = vsel %vm690, %v686, 0
  %1016 = vmatprep.subr.bf16.mxu0 0
  %1017 = vmatpush1.bf16.msra.mxu0 %v1014
  %1018 = vmatprep.subr.bf16.mxu0 0
  %1019 = vmatpush1.bf16.msra.mxu0 0
  %1020 = vmatprep.subr.bf16.mxu0 0
  %1021 = vmatpush1.bf16.msra.mxu0 0
  %1022 = vmatprep.subr.bf16.mxu0 0
  %1023 = vmatpush1.bf16.msra.mxu0 0
  %1024 = vmatprep.subr.bf16.mxu0 0
  %1025 = vmatpush1.bf16.msra.mxu0 0
  %1026 = vmatprep.subr.bf16.mxu0 0
  %1027 = vmatpush1.bf16.msra.mxu0 0
  %1028 = vmatprep.subr.bf16.mxu0 0
  %1029 = vmatpush1.bf16.msra.mxu0 0
  %1030 = vmatprep.subr.bf16.mxu0 0
  %1031 = vmatpush1.bf16.msra.mxu0 0
  %1032 = vmatprep.subr.bf16.mxu0 0
  %1033 = vmatpush1.bf16.msra.mxu0 0
  %1034 = vmatprep.subr.bf16.mxu0 0
  %1035 = vmatpush1.bf16.msra.mxu0 0
  %1036 = vmatprep.subr.bf16.mxu0 0
  %1037 = vmatpush1.bf16.msra.mxu0 0
  %1038 = vmatprep.subr.bf16.mxu0 0
  %1039 = vmatpush1.bf16.msra.mxu0 0
  %1040 = vmatprep.subr.bf16.mxu0 0
  %1041 = vmatpush1.bf16.msra.mxu0 0
  %1042 = vmatprep.subr.bf16.mxu0 0
  %1043 = vmatpush1.bf16.msra.mxu0 0
  %1044 = vmatprep.subr.bf16.mxu0 0
  %1045 = vmatpush1.bf16.msra.mxu0 0
  %1046 = vmatprep.subr.bf16.mxu0 0
  %1047 = vmatpush1.bf16.msra.mxu0 0
  %1048 = vmatprep.mubr.bf16.mxu0 0
  %1049 = vmatmul.mubr.bf16.gmra.mrb[0].mxu0 %v1011
  %v1050 = vpop.f32.mrb[0].mxu0
  %v1051 = vadd.f32 0.0, %v1050
  %v1052 = vpop.f32.mrb[0].mxu0
  %v1053 = vpop.f32.mrb[0].mxu0
  %v1054 = vpop.f32.mrb[0].mxu0
  %1055 = vdwg.mxu0
  %v1056 = vadd.f32 %v663, %v729
  %v1057 = vadd.f32 %v664, %v775
  %v1058 = vadd.f32 %v665, %v821
  %v1059 = vadd.f32 %v666, %v867
  %v1060 = vadd.f32 %v667, %v913
  %v1061 = vadd.f32 %v668, %v959
  %v1062 = vadd.f32 %v669, %v1005
  %v1063 = vadd.f32 %v670, %v1051
  %1064 = vst.msk [vmem:[#allocation4] sm:$0xff] %vm61, %v1056
  %1065 = vst.msk [vmem:[#allocation4 + $0x8] sm:$0xff] %vm61, %v1057
  %1066 = vst.msk [vmem:[#allocation4 + $0x10] sm:$0xff] %vm61, %v1058
  %1067 = vst.msk [vmem:[#allocation4 + $0x18] sm:$0xff] %vm61, %v1059
  %1068 = vst.msk [vmem:[#allocation4 + $0x20] sm:$0xff] %vm61, %v1060
  %1069 = vst.msk [vmem:[#allocation4 + $0x28] sm:$0xff] %vm61, %v1061
  %1070 = vst.msk [vmem:[#allocation4 + $0x30] sm:$0xff] %vm61, %v1062
  %1071 = vst.msk [vmem:[#allocation4 + $0x38] sm:$0xff] %vm61, %v1063
  %1072 = vst.msk [vmem:[#allocation2] sm:$0xff] %vm606, %v462
  %1073 = vst.msk [vmem:[#allocation2 + $0x8] sm:$0xff] %vm606, %v463
  %1074 = vst.msk [vmem:[#allocation2 + $0x10] sm:$0xff] %vm606, %v464
  %1075 = vst.msk [vmem:[#allocation2 + $0x18] sm:$0xff] %vm606, %v465
  %1076 = vst.msk [vmem:[#allocation2 + $0x20] sm:$0xff] %vm606, %v466
  %1077 = vst.msk [vmem:[#allocation2 + $0x28] sm:$0xff] %vm606, %v467
  %1078 = vst.msk [vmem:[#allocation2 + $0x30] sm:$0xff] %vm606, %v468
  %1079 = vst.msk [vmem:[#allocation2 + $0x38] sm:$0xff] %vm606, %v469
  // Predicated region
  $region18: #{multi_headed_attention.4} parent=0 // pred_check
    %p1080 = pneg %p15
  $region19: #{multi_headed_attention.4} parent=0 // pred_check_branch
    %1082 = sbr.rel (%p1080) target = $region21
  $region20: #{multi_headed_attention.4} parent=0 // pred_region
    %v1083 = vld [vmem:[#allocation3] sm:$0xff]
    %v1084 = vld [vmem:[#allocation3 + $0x8] sm:$0xff]
    %v1085 = vld [vmem:[#allocation3 + $0x10] sm:$0xff]
    %v1086 = vld [vmem:[#allocation3 + $0x18] sm:$0xff]
    %v1087 = vld [vmem:[#allocation3 + $0x20] sm:$0xff]
    %v1088 = vld [vmem:[#allocation3 + $0x28] sm:$0xff]
    %v1089 = vld [vmem:[#allocation3 + $0x30] sm:$0xff]
    %v1090 = vld [vmem:[#allocation3 + $0x38] sm:$0xff]
    %v1091 = vrcp.pop %v1083
    %v1092 = vrcp.pop %v1084
    %v1093 = vrcp.pop %v1085
    %v1094 = vrcp.pop %v1086
    %v1095 = vrcp.pop %v1087
    %v1096 = vrcp.pop %v1088
    %v1097 = vrcp.pop %v1089
    %v1098 = vrcp.pop %v1090
    %v1099 = vld [vmem:[#allocation4] sm:$0xff]
    %v1100 = vld [vmem:[#allocation4 + $0x8] sm:$0xff]
    %v1101 = vld [vmem:[#allocation4 + $0x10] sm:$0xff]
    %v1102 = vld [vmem:[#allocation4 + $0x18] sm:$0xff]
    %v1103 = vld [vmem:[#allocation4 + $0x20] sm:$0xff]
    %v1104 = vld [vmem:[#allocation4 + $0x28] sm:$0xff]
    %v1105 = vld [vmem:[#allocation4 + $0x30] sm:$0xff]
    %v1106 = vld [vmem:[#allocation4 + $0x38] sm:$0xff]
    %1108 = vset.pattern.permute.xlu0 0
    %1109 = vperm.xlu0 %1108, %v1091
    %v1110 = vpop.permute.xlu0 %1109
    %1113 = vset.pattern.permute.xlu0 0
    %1114 = vperm.xlu0 %1113, %v1092
    %v1115 = vpop.permute.xlu0 %1114
    %1118 = vset.pattern.permute.xlu0 0
    %1119 = vperm.xlu0 %1118, %v1093
    %v1120 = vpop.permute.xlu0 %1119
    %1123 = vset.pattern.permute.xlu0 0
    %1124 = vperm.xlu0 %1123, %v1094
    %v1125 = vpop.permute.xlu0 %1124
    %1128 = vset.pattern.permute.xlu0 0
    %1129 = vperm.xlu0 %1128, %v1095
    %v1130 = vpop.permute.xlu0 %1129
    %1133 = vset.pattern.permute.xlu0 0
    %1134 = vperm.xlu0 %1133, %v1096
    %v1135 = vpop.permute.xlu0 %1134
    %1138 = vset.pattern.permute.xlu0 0
    %1139 = vperm.xlu0 %1138, %v1097
    %v1140 = vpop.permute.xlu0 %1139
    %1143 = vset.pattern.permute.xlu0 0
    %1144 = vperm.xlu0 %1143, %v1098
    %v1145 = vpop.permute.xlu0 %1144
    %v1147 = vmul.f32 %v1099, %v1110
    %v1148 = vmul.f32 %v1100, %v1115
    %v1149 = vmul.f32 %v1101, %v1120
    %v1150 = vmul.f32 %v1102, %v1125
    %v1151 = vmul.f32 %v1103, %v1130
    %v1152 = vmul.f32 %v1104, %v1135
    %v1153 = vmul.f32 %v1105, %v1140
    %v1154 = vmul.f32 %v1106, %v1145
    %v1155 = vpack.c.bf16 %v1147, %v1147
    %v1156 = vpack.c.bf16 %v1148, %v1148
    %v1157 = vpack.c.bf16 %v1149, %v1149
    %v1158 = vpack.c.bf16 %v1150, %v1150
    %v1159 = vpack.c.bf16 %v1151, %v1151
    %v1160 = vpack.c.bf16 %v1152, %v1152
    %v1161 = vpack.c.bf16 %v1153, %v1153
    %v1162 = vpack.c.bf16 %v1154, %v1154
    %vm1163 = vcmask 60416
    %1164 = vst.msk [vmem:[%s3] sm:$0xf] %vm1163, %v1155
    %1165 = vst.msk [vmem:[%s3 + $0x4] sm:$0xf] %vm1163, %v1156
    %1166 = vst.msk [vmem:[%s3 + $0x8] sm:$0xf] %vm1163, %v1157
    %1167 = vst.msk [vmem:[%s3 + $0xc] sm:$0xf] %vm1163, %v1158
    %1168 = vst.msk [vmem:[%s3 + $0x10] sm:$0xf] %vm1163, %v1159
    %1169 = vst.msk [vmem:[%s3 + $0x14] sm:$0xf] %vm1163, %v1160
    %1170 = vst.msk [vmem:[%s3 + $0x18] sm:$0xf] %vm1163, %v1161
    %1171 = vst.msk [vmem:[%s3 + $0x1c] sm:$0xf] %vm1163, %v1162
  $region21: #{multi_headed_attention.4} parent=0 // pred_fallthru
    _
  // Predicated region
  $region22: #{multi_headed_attention.4} parent=0 // pred_check
    _
  $region23: #{multi_headed_attention.4} parent=0 // pred_check_branch
    %1173 = sbr.rel (0) target = $region25
  $region24: #{multi_headed_attention.4} parent=0 // pred_region
    _
  $region25: #{multi_headed_attention.4} parent=0 // pred_fallthru
    _
  // Predicated region
  $region26: #{multi_headed_attention.4} parent=0 // pred_check
    _
  $region27: #{multi_headed_attention.4} parent=0 // pred_check_branch
    %1175 = sbr.rel (0) target = $region29
  $region28: #{multi_headed_attention.4} parent=0 // pred_region
    _
  $region29: #{multi_headed_attention.4} parent=0 // pred_fallthru
    _

</llo_original>
